<compile_context>
chip_gen: v7x
topology: tpu7x:2x2x1
jax: 0.10.0
libtpu: 0.0.40
codegen_flags: <defaults>
</compile_context>

<pallas_src>
import functools

import jax
import jax.numpy as jnp
from jax.experimental import pallas as pl
from jax.experimental.pallas import tpu as pltpu


def _round_up(v, m):
    return ((v + m - 1) // m) * m


def _vmem_bytes(shape, dtype):
    """Real VMEM footprint: last dim rounds to 128 lanes, second-to-last to the
    dtype's sublane packing (8 for 4B, 16 for 2B, 32 for 1B)."""
    itemsize = jnp.dtype(dtype).itemsize
    sublane = {4: 8, 2: 16, 1: 32}[itemsize]
    *lead, rows, cols = shape
    n_lead = 1
    for d in lead:
        n_lead *= d
    return n_lead * _round_up(rows, sublane) * _round_up(cols, 128) * itemsize


def _working_set_bytes(tm, n_pad, c_in, hp, cp, K):
    """Declared VMEM working set, counting the default 2-deep pipeline buffers."""
    return (2 * _vmem_bytes((tm, n_pad), jnp.bfloat16)         # L_hat row tiles
            + 2 * _vmem_bytes((n_pad, c_in), jnp.bfloat16)     # resident x
            + _vmem_bytes((K - 1, n_pad, c_in), jnp.bfloat16)  # Chebyshev scratch
            + 2 * _vmem_bytes((tm, cp), jnp.float32)           # output tiles
            + 2 * _vmem_bytes((K, c_in, 2 * hp), jnp.float32)  # gate weights
            + 2 * _vmem_bytes((1, 2 * hp), jnp.float32)        # gate bias
            + 2 * _vmem_bytes((hp, cp), jnp.float32)           # linear weight
            + 2 * _vmem_bytes((1, cp), jnp.float32))           # linear bias


def _vmem_capacity_bytes():
    try:
        return int(pltpu.get_tpu_info().vmem_capacity_bytes)
    except Exception:
        return 64 * 1024 * 1024    # conservative fallback (v7x-sized VMEM)


def _pick_tiling(num_nodes, c_in, hp, cp, K):
    """Choose (row tile TM, padded node dim N_pad), generation-aware.

    Fast path: if the whole bf16 L_hat fits the VMEM budget, use one row tile
    covering all nodes so every block index is constant and L_hat is read from
    HBM exactly once.  Otherwise stream the largest L row tile that fits.
    """
    budget = int(_vmem_capacity_bytes() * 0.8) - (4 << 20)
    n128 = _round_up(max(num_nodes, 1), 128)
    if _working_set_bytes(n128, n128, c_in, hp, cp, K) <= budget:
        return n128, n128
    for tm in (2048, 1024, 512, 256, 128, 64, 32, 16):   # all bf16-sublane (16) aligned
        n_pad = _round_up(num_nodes, max(tm, 128))
        if tm > n_pad:
            continue
        if _working_set_bytes(tm, n_pad, c_in, hp, cp, K) <= budget:
            return tm, n_pad
    return 16, _round_up(num_nodes, 128)


def _build_scaled_laplacian(edge_index, edge_weight, num_nodes):
    """Dense PyG ChebConv scaled Laplacian (sym norm, lambda_max = 2):
    L_hat[dst, src] = -deg^{-1/2}[src] * w(src,dst) * deg^{-1/2}[dst], zero diag."""
    edge_weight = edge_weight.astype(jnp.float32)
    row, col = edge_index[0], edge_index[1]
    deg = jnp.zeros((num_nodes,), jnp.float32).at[row].add(edge_weight)
    dinv = jnp.where(deg > 0.0, jax.lax.rsqrt(deg), 0.0)
    norm = -dinv[row] * edge_weight * dinv[col]
    return jnp.zeros((num_nodes, num_nodes), jnp.float32).at[col, row].add(norm)


def _gconv_gru_kernel(lap_ref, x_ref, wg_ref, bg_ref, wlin_ref, blin_ref,
                      out_ref, t_ref, *, K, TM, HP):
    """Grid = (K-1 Chebyshev passes, node row tiles); the pass axis is OUTER.

    Pass j (order k = j + 1) computes the current tile's rows of T_k from the
    full T_{k-1} kept in the persistent bf16 scratch `t_ref` (T_0 == x is read
    straight from the resident x block and is never stored).  The last pass
    also runs the gate pre-activation (per-order dot-accumulate), the GRU
    update with H_prev = 0, ReLU and the output linear layer for this tile.
    """
    kidx = pl.program_id(0)
    i = pl.program_id(1)
    r0 = pl.multiple_of(i * TM, TM)

    def propagation_pass(j):
        k = j + 1
        lap = lap_ref[...]                                   # [TM, N_pad] bf16
        if k == 1:
            t_new = jnp.dot(lap, x_ref[...],                 # T_1 = L_hat @ x
                            preferred_element_type=jnp.float32)
        else:
            t_prev = t_ref[k - 2]                            # T_{k-1}, ALL rows, bf16
            if k == 2:
                t_prev2 = x_ref[pl.ds(r0, TM), :]            # T_0 rows == x rows
            else:
                t_prev2 = t_ref[k - 3, pl.ds(r0, TM), :]
            t_new = (2.0 * jnp.dot(lap, t_prev, preferred_element_type=jnp.float32)
                     - t_prev2.astype(jnp.float32))
        t_ref[k - 1, pl.ds(r0, TM), :] = t_new.astype(jnp.bfloat16)

    # Static unroll over passes -> only static scratch indices inside each branch.
    for j in range(K - 1):
        pl.when(kidx == j)(functools.partial(propagation_pass, j))

    @pl.when(kidx == K - 2)
    def _finalize():
        # Gate pre-activation g = sum_k T_k @ [Wxz_k | Wxh_k] + [bz | bh].
        g = jnp.dot(x_ref[pl.ds(r0, TM), :].astype(jnp.float32), wg_ref[0],
                    preferred_element_type=jnp.float32)
        for k in range(1, K):
            g = g + jnp.dot(t_ref[k - 1, pl.ds(r0, TM), :].astype(jnp.float32),
                            wg_ref[k], preferred_element_type=jnp.float32)
        g = g + bg_ref[...]
        z = jax.nn.sigmoid(g[:, :HP])
        h_tilde = jnp.tanh(g[:, HP:])
        # H_prev = 0  =>  H = (1 - Z) * H_tilde ; then F.relu.
        h = jnp.maximum((1.0 - z) * h_tilde, 0.0)
        out = jnp.dot(h, wlin_ref[...], preferred_element_type=jnp.float32) + blin_ref[...]
        out_ref[...] = out.astype(out_ref.dtype)
    # Non-final passes intentionally leave out_ref untouched: kidx is the outer
    # (slowest) grid axis, so the kidx == K-2 write above is the final writeback
    # for every output block; earlier writebacks of stale data are overwritten.


def recurrent_gconv_gru(x, edge_index, edge_weight, params, num_nodes):
    """GConvGRU(x, H=None) -> ReLU -> Linear with the dense hot path in one Pallas kernel."""
    # The edge-list scatter that builds the dense scaled Laplacian stays in plain JAX.
    # TODO(synk): for graphs with avg degree << N, replace the dense L_hat with a CSR
    # gather / SpMM kernel (PrefetchScalarGridSpec over neighbor lists) so per-pass
    # traffic is O(E * c) instead of O(N^2).
    lap = _build_scaled_laplacian(edge_index, edge_weight, num_nodes)

    K, c_in, hidden = params["wxz"].shape
    c_out = params["wlin"].shape[-1]
    assert K >= 2, "kernel assumes Chebyshev order K >= 2 (module default K=3)"

    hp = _round_up(hidden, 128)          # lane-dense gate width
    cp = _round_up(c_out, 128)           # lane-dense output width
    tm, n_pad = _pick_tiling(num_nodes, c_in, hp, cp, K)
    num_tiles = n_pad // tm

    # Pad node rows/cols (padded rows of L/x are zero; sliced off at the end).
    lap_p = jnp.pad(lap, ((0, n_pad - num_nodes), (0, n_pad - num_nodes))).astype(jnp.bfloat16)
    # TODO(synk): when L cannot be resident, stream it as int8 (v5e/v6e) or fp8-e4m3
    # (v7x) with a per-row scale dequantized in VMEM to halve the dominant HBM stream.
    x_p = jnp.pad(x.astype(jnp.float32),
                  ((0, n_pad - num_nodes), (0, 0))).astype(jnp.bfloat16)

    # H starts at zero (forward passes H=None), hence
    #   Z       = sigmoid(sum_k T_k x Wxz_k + bxz + bhz)
    #   H_tilde = tanh   (sum_k T_k x Wxh_k + bxh + bhh)
    #   H       = (1 - Z) * H_tilde
    # The reset gate (wxr/bxr/whr/bhr) and the h-path Chebyshev weights (whz/whh)
    # are mathematically dead for this module and are not used.
    def pad_lanes(a, width):
        return jnp.pad(a, ((0, 0),) * (a.ndim - 1) + ((0, width - a.shape[-1]),))

    wz = pad_lanes(params["wxz"].astype(jnp.float32), hp)      # [K, C_in, Hp]
    wh = pad_lanes(params["wxh"].astype(jnp.float32), hp)      # [K, C_in, Hp]
    w_gate = jnp.concatenate([wz, wh], axis=-1)                # [K, C_in, 2*Hp]
    bz = pad_lanes((params["bxz"] + params["bhz"]).astype(jnp.float32).reshape(1, hidden), hp)
    bh = pad_lanes((params["bxh"] + params["bhh"]).astype(jnp.float32).reshape(1, hidden), hp)
    b_gate = jnp.concatenate([bz, bh], axis=-1)                # [1, 2*Hp]

    w_lin = jnp.zeros((hp, cp), jnp.float32).at[:hidden, :c_out].set(
        params["wlin"].astype(jnp.float32))
    b_lin = pad_lanes(params["blin"].astype(jnp.float32).reshape(1, c_out), cp)

    kernel = functools.partial(_gconv_gru_kernel, K=K, TM=tm, HP=hp)

    # Scoped VMEM limit sized from the tile-padded working set, clamped to physical VMEM.
    vmem_cap = _vmem_capacity_bytes()
    ws = _working_set_bytes(tm, n_pad, c_in, hp, cp, K)
    vmem_limit = int(ws * 1.2) + (8 << 20)
    vmem_limit = max(vmem_limit, 32 << 20)
    vmem_limit = min(vmem_limit, vmem_cap - (2 << 20))

    out_p = pl.pallas_call(
        kernel,
        out_shape=jax.ShapeDtypeStruct((n_pad, cp), jnp.float32),
        grid_spec=pltpu.PrefetchScalarGridSpec(
            num_scalar_prefetch=0,
            # kidx (Chebyshev pass) MUST stay the outer / slowest grid axis: pass
            # k+1 reads T_k rows written by all tiles of pass k, and the final-pass
            # write must be the last writeback to each output block.
            grid=(K - 1, num_tiles),
            in_specs=[
                # L_hat rows.  When num_tiles == 1 (resident fast path) this block
                # index is constant, so L_hat is DMA'd from HBM exactly once.
                pl.BlockSpec((tm, n_pad), lambda k, i: (i, 0)),
                pl.BlockSpec((n_pad, c_in), lambda k, i: (0, 0)),         # x (resident, bf16)
                pl.BlockSpec((K, c_in, 2 * hp), lambda k, i: (0, 0, 0)),  # gate weights
                pl.BlockSpec((1, 2 * hp), lambda k, i: (0, 0)),           # fused gate bias
                pl.BlockSpec((hp, cp), lambda k, i: (0, 0)),              # linear weight
                pl.BlockSpec((1, cp), lambda k, i: (0, 0)),               # linear bias
            ],
            out_specs=pl.BlockSpec((tm, cp), lambda k, i: (i, 0)),
            scratch_shapes=[pltpu.VMEM((K - 1, n_pad, c_in), jnp.bfloat16)],
        ),
        # Both axes "arbitrary": Chebyshev pass k+1 reads T_k rows written by *other*
        # row tiles through the per-core VMEM scratch, so the tile axis cannot be
        # sharded across TensorCores as-is.
        # TODO(synk): on v7x, use the second TensorCore by column-splitting each pass
        # (per-core partial L[:, half] @ T_{k-1}[half, :]) and reducing the small
        # [N, c_in] partials through CMEM/VMEM_SHARED with a core_barrier per pass.
        compiler_params=pltpu.CompilerParams(
            dimension_semantics=("arbitrary", "arbitrary"),
            vmem_limit_bytes=int(vmem_limit),
        ),
    )(lap_p, x_p, w_gate, b_gate, w_lin, b_lin)

    return out_p[:num_nodes, :c_out]


if __name__ == "__main__":
    key = jax.random.PRNGKey(0)
    N, C_IN, C_HID, C_OUT, K = 16, 4, 32, 8, 3

    keys = jax.random.split(key, 16)
    x = jax.random.normal(keys[0], (N, C_IN), jnp.float32)

    # Undirected ring graph (both directions), no self-loops.
    src = jnp.arange(N, dtype=jnp.int32)
    dst = (src + 1) % N
    edge_index = jnp.stack([jnp.concatenate([src, dst]),
                            jnp.concatenate([dst, src])], axis=0)
    w = jax.random.uniform(keys[1], (N,), jnp.float32, minval=0.5, maxval=1.5)
    edge_weight = jnp.concatenate([w, w])

    def cheb_params(k_w, k_b, c_in, c_out):
        wgt = 0.1 * jax.random.normal(k_w, (K, c_in, c_out), jnp.float32)
        bias = 0.01 * jax.random.normal(k_b, (1, c_out), jnp.float32)
        return wgt, bias

    params = {}
    params["wxz"], params["bxz"] = cheb_params(keys[2], keys[3], C_IN, C_HID)
    params["whz"], params["bhz"] = cheb_params(keys[4], keys[5], C_HID, C_HID)
    params["wxr"], params["bxr"] = cheb_params(keys[6], keys[7], C_IN, C_HID)
    params["whr"], params["bhr"] = cheb_params(keys[8], keys[9], C_HID, C_HID)
    params["wxh"], params["bxh"] = cheb_params(keys[10], keys[11], C_IN, C_HID)
    params["whh"], params["bhh"] = cheb_params(keys[12], keys[13], C_HID, C_HID)
    # nn.Linear(hidden, out): stored transposed as [C_HID, C_OUT]
    params["wlin"] = 0.1 * jax.random.normal(keys[14], (C_HID, C_OUT), jnp.float32)
    params["blin"] = 0.01 * jax.random.normal(keys[15], (1, C_OUT), jnp.float32)

    out = recurrent_gconv_gru(x, edge_index, edge_weight, params, num_nodes=N)
    out = jax.block_until_ready(out)
    assert out.shape == (N, C_OUT) and out.dtype == jnp.float32
    assert bool(jnp.all(jnp.isfinite(out)))

    # Pure-JAX f32 reference of the same forward (GConvGRU with H=None -> ReLU -> Linear).
    lap = _build_scaled_laplacian(edge_index, edge_weight, N)
    tx = [x, lap @ x]
    for _ in range(2, K):
        tx.append(2.0 * (lap @ tx[-1]) - tx[-2])

    def cheb(wname, bname):
        return sum(tx[k] @ params[wname][k] for k in range(K)) + params[bname]

    z_ref = jax.nn.sigmoid(cheb("wxz", "bxz") + params["bhz"])
    h_ref = jnp.tanh(cheb("wxh", "bxh") + params["bhh"])
    h_ref = jnp.maximum((1.0 - z_ref) * h_ref, 0.0)
    ref = h_ref @ params["wlin"] + params["blin"]
    err = float(jnp.max(jnp.abs(out - ref)))
    assert err < 3e-2, f"max |kernel - reference| = {err}"

    print("KERNEL_OK")
</pallas_src>

<mosaic_0001>
module attributes {stable_mosaic.version = 11 : i64} {
  func.func @_gconv_gru_kernel(%arg0: i32, %arg1: i32, %arg2: memref<128x128xbf16, #tpu.memory_space<vmem>>, %arg3: memref<128x4xbf16, #tpu.memory_space<vmem>>, %arg4: memref<3x4x256xf32, #tpu.memory_space<vmem>>, %arg5: memref<1x256xf32, #tpu.memory_space<vmem>>, %arg6: memref<128x128xf32, #tpu.memory_space<vmem>>, %arg7: memref<1x128xf32, #tpu.memory_space<vmem>>, %arg8: memref<128x128xf32, #tpu.memory_space<vmem>>, %arg9: memref<2x128x4xbf16, #tpu.memory_space<vmem>>) attributes {dimension_semantics = [#tpu.dimension_semantics<arbitrary>, #tpu.dimension_semantics<arbitrary>], iteration_bounds = array<i64: 2, 1>, scalar_prefetch = 0 : i64, scratch_operands = 1 : i64, tpu.core_type = #tpu.core_type<tc>, window_params = [{transform_indices = @transform_0, window_bounds = array<i64: 128, 128>}, {pipeline_mode = #tpu.pipeline_mode<synchronous>, transform_indices = @transform_1, window_bounds = array<i64: 128, 4>}, {pipeline_mode = #tpu.pipeline_mode<synchronous>, transform_indices = @transform_2, window_bounds = array<i64: 3, 4, 256>}, {pipeline_mode = #tpu.pipeline_mode<synchronous>, transform_indices = @transform_3, window_bounds = array<i64: 1, 256>}, {pipeline_mode = #tpu.pipeline_mode<synchronous>, transform_indices = @transform_4, window_bounds = array<i64: 128, 128>}, {pipeline_mode = #tpu.pipeline_mode<synchronous>, transform_indices = @transform_5, window_bounds = array<i64: 1, 128>}, {transform_indices = @transform_6, window_bounds = array<i64: 128, 128>}]} {
    %c128_i32 = arith.constant 128 : i32
    %0 = arith.muli %arg1, %c128_i32 : i32
    %1 = tpu.assume_multiple %0, 128 : i32
    %c0_i32 = arith.constant 0 : i32
    %2 = arith.cmpi eq, %arg0, %c0_i32 : i32
    %3 = arith.extui %2 : i1 to i32
    %c0_i32_0 = arith.constant 0 : i32
    %4 = arith.cmpi ne, %3, %c0_i32_0 : i32
    scf.if %4 {
      %c0 = arith.constant 0 : index
      %c0_4 = arith.constant 0 : index
      %11 = vector.load %arg2[%c0, %c0_4] : memref<128x128xbf16, #tpu.memory_space<vmem>>, vector<128x128xbf16>
      %c0_5 = arith.constant 0 : index
      %c0_6 = arith.constant 0 : index
      %12 = vector.load %arg3[%c0_5, %c0_6] : memref<128x4xbf16, #tpu.memory_space<vmem>>, vector<128x4xbf16>
      %cst = arith.constant dense<0.000000e+00> : vector<128x4xf32>
      %13 = tpu.matmul %11, %12, %cst {dimension_numbers = #tpu.dot_dimension_numbers<[1], [0], [0], [1], [0, 0, 1, 1], [], []>} : vector<128x128xbf16>, vector<128x4xbf16>, vector<128x4xf32> -> vector<128x4xf32>
      %14 = arith.truncf %13 : vector<128x4xf32> to vector<128x4xbf16>
      %c0_7 = arith.constant 0 : index
      %15 = arith.index_cast %1 : i32 to index
      %c0_8 = arith.constant 0 : index
      %16 = vector.load %arg9[%c0_7, %15, %c0_8] : memref<2x128x4xbf16, #tpu.memory_space<vmem>>, vector<1x128x4xbf16>
      %17 = vector.shape_cast %16 : vector<1x128x4xbf16> to vector<128x4xbf16>
      %18 = vector.shape_cast %14 : vector<128x4xbf16> to vector<1x128x4xbf16>
      tpu.vector_store %arg9[%c0_7, %15, %c0_8], %18 {strides = array<i32>} : memref<2x128x4xbf16, #tpu.memory_space<vmem>>, vector<1x128x4xbf16>,
    } else {
    }
    %c1_i32 = arith.constant 1 : i32
    %5 = arith.cmpi eq, %arg0, %c1_i32 : i32
    %6 = arith.extui %5 : i1 to i32
    %c0_i32_1 = arith.constant 0 : i32
    %7 = arith.cmpi ne, %6, %c0_i32_1 : i32
    scf.if %7 {
      %c0 = arith.constant 0 : index
      %c0_4 = arith.constant 0 : index
      %11 = vector.load %arg2[%c0, %c0_4] : memref<128x128xbf16, #tpu.memory_space<vmem>>, vector<128x128xbf16>
      %c0_5 = arith.constant 0 : index
      %c0_6 = arith.constant 0 : index
      %c0_7 = arith.constant 0 : index
      %12 = vector.load %arg9[%c0_5, %c0_6, %c0_7] : memref<2x128x4xbf16, #tpu.memory_space<vmem>>, vector<1x128x4xbf16>
      %13 = vector.shape_cast %12 : vector<1x128x4xbf16> to vector<128x4xbf16>
      %14 = arith.index_cast %1 : i32 to index
      %c0_8 = arith.constant 0 : index
      %15 = vector.load %arg3[%14, %c0_8] : memref<128x4xbf16, #tpu.memory_space<vmem>>, vector<128x4xbf16>
      %cst = arith.constant dense<0.000000e+00> : vector<128x4xf32>
      %16 = tpu.matmul %11, %13, %cst {dimension_numbers = #tpu.dot_dimension_numbers<[1], [0], [0], [1], [0, 0, 1, 1], [], []>} : vector<128x128xbf16>, vector<128x4xbf16>, vector<128x4xf32> -> vector<128x4xf32>
      %cst_9 = arith.constant 2.000000e+00 : f32
      %17 = vector.broadcast %cst_9 : f32 to vector<128x4xf32>
      %18 = arith.mulf %17, %16 : vector<128x4xf32>
      %19 = arith.extf %15 : vector<128x4xbf16> to vector<128x4xf32>
      %20 = arith.subf %18, %19 : vector<128x4xf32>
      %21 = arith.truncf %20 : vector<128x4xf32> to vector<128x4xbf16>
      %c1 = arith.constant 1 : index
      %22 = arith.index_cast %1 : i32 to index
      %c0_10 = arith.constant 0 : index
      %23 = vector.load %arg9[%c1, %22, %c0_10] : memref<2x128x4xbf16, #tpu.memory_space<vmem>>, vector<1x128x4xbf16>
      %24 = vector.shape_cast %23 : vector<1x128x4xbf16> to vector<128x4xbf16>
      %25 = vector.shape_cast %21 : vector<128x4xbf16> to vector<1x128x4xbf16>
      tpu.vector_store %arg9[%c1, %22, %c0_10], %25 {strides = array<i32>} : memref<2x128x4xbf16, #tpu.memory_space<vmem>>, vector<1x128x4xbf16>,
    } else {
    }
    %c1_i32_2 = arith.constant 1 : i32
    %8 = arith.cmpi eq, %arg0, %c1_i32_2 : i32
    %9 = arith.extui %8 : i1 to i32
    %c0_i32_3 = arith.constant 0 : i32
    %10 = arith.cmpi ne, %9, %c0_i32_3 : i32
    scf.if %10 {
      %11 = arith.index_cast %1 : i32 to index
      %c0 = arith.constant 0 : index
      %12 = vector.load %arg3[%11, %c0] : memref<128x4xbf16, #tpu.memory_space<vmem>>, vector<128x4xbf16>
      %13 = arith.extf %12 : vector<128x4xbf16> to vector<128x4xf32>
      %c0_4 = arith.constant 0 : index
      %c0_5 = arith.constant 0 : index
      %c0_6 = arith.constant 0 : index
      %14 = vector.load %arg4[%c0_4, %c0_5, %c0_6] : memref<3x4x256xf32, #tpu.memory_space<vmem>>, vector<1x4x256xf32>
      %15 = vector.shape_cast %14 : vector<1x4x256xf32> to vector<4x256xf32>
      %cst = arith.constant dense<0.000000e+00> : vector<128x256xf32>
      %16 = tpu.matmul %13, %15, %cst {dimension_numbers = #tpu.dot_dimension_numbers<[1], [0], [0], [1], [0, 0, 1, 1], [], []>} : vector<128x4xf32>, vector<4x256xf32>, vector<128x256xf32> -> vector<128x256xf32>
      %c0_7 = arith.constant 0 : index
      %17 = arith.index_cast %1 : i32 to index
      %c0_8 = arith.constant 0 : index
      %18 = vector.load %arg9[%c0_7, %17, %c0_8] : memref<2x128x4xbf16, #tpu.memory_space<vmem>>, vector<1x128x4xbf16>
      %19 = vector.shape_cast %18 : vector<1x128x4xbf16> to vector<128x4xbf16>
      %20 = arith.extf %19 : vector<128x4xbf16> to vector<128x4xf32>
      %c1 = arith.constant 1 : index
      %c0_9 = arith.constant 0 : index
      %c0_10 = arith.constant 0 : index
      %21 = vector.load %arg4[%c1, %c0_9, %c0_10] : memref<3x4x256xf32, #tpu.memory_space<vmem>>, vector<1x4x256xf32>
      %22 = vector.shape_cast %21 : vector<1x4x256xf32> to vector<4x256xf32>
      %cst_11 = arith.constant dense<0.000000e+00> : vector<128x256xf32>
      %23 = tpu.matmul %20, %22, %cst_11 {dimension_numbers = #tpu.dot_dimension_numbers<[1], [0], [0], [1], [0, 0, 1, 1], [], []>} : vector<128x4xf32>, vector<4x256xf32>, vector<128x256xf32> -> vector<128x256xf32>
      %24 = arith.addf %16, %23 : vector<128x256xf32>
      %c1_12 = arith.constant 1 : index
      %25 = arith.index_cast %1 : i32 to index
      %c0_13 = arith.constant 0 : index
      %26 = vector.load %arg9[%c1_12, %25, %c0_13] : memref<2x128x4xbf16, #tpu.memory_space<vmem>>, vector<1x128x4xbf16>
      %27 = vector.shape_cast %26 : vector<1x128x4xbf16> to vector<128x4xbf16>
      %28 = arith.extf %27 : vector<128x4xbf16> to vector<128x4xf32>
      %c2 = arith.constant 2 : index
      %c0_14 = arith.constant 0 : index
      %c0_15 = arith.constant 0 : index
      %29 = vector.load %arg4[%c2, %c0_14, %c0_15] : memref<3x4x256xf32, #tpu.memory_space<vmem>>, vector<1x4x256xf32>
      %30 = vector.shape_cast %29 : vector<1x4x256xf32> to vector<4x256xf32>
      %cst_16 = arith.constant dense<0.000000e+00> : vector<128x256xf32>
      %31 = tpu.matmul %28, %30, %cst_16 {dimension_numbers = #tpu.dot_dimension_numbers<[1], [0], [0], [1], [0, 0, 1, 1], [], []>} : vector<128x4xf32>, vector<4x256xf32>, vector<128x256xf32> -> vector<128x256xf32>
      %32 = arith.addf %24, %31 : vector<128x256xf32>
      %c0_17 = arith.constant 0 : index
      %c0_18 = arith.constant 0 : index
      %33 = vector.load %arg5[%c0_17, %c0_18] : memref<1x256xf32, #tpu.memory_space<vmem>>, vector<1x256xf32>
      %34 = vector.broadcast %33 : vector<1x256xf32> to vector<128x256xf32>
      %35 = arith.addf %32, %34 : vector<128x256xf32>
      %36 = vector.extract_strided_slice %35 {offsets = [0, 0], sizes = [128, 128], strides = [1, 1]} : vector<128x256xf32> to vector<128x128xf32>
      %37 = arith.negf %36 : vector<128x128xf32>
      %38 = math.exp %37 : vector<128x128xf32>
      %cst_19 = arith.constant 1.000000e+00 : f32
      %39 = vector.broadcast %cst_19 : f32 to vector<128x128xf32>
      %40 = arith.addf %39, %38 : vector<128x128xf32>
      %41 = arith.divf %39, %40 : vector<128x128xf32>
      %42 = vector.extract_strided_slice %35 {offsets = [0, 128], sizes = [128, 128], strides = [1, 1]} : vector<128x256xf32> to vector<128x128xf32>
      %43 = math.tanh %42 : vector<128x128xf32>
      %cst_20 = arith.constant 1.000000e+00 : f32
      %44 = vector.broadcast %cst_20 : f32 to vector<128x128xf32>
      %45 = arith.subf %44, %41 : vector<128x128xf32>
      %46 = arith.mulf %45, %43 : vector<128x128xf32>
      %cst_21 = arith.constant 0.000000e+00 : f32
      %47 = vector.broadcast %cst_21 : f32 to vector<128x128xf32>
      %48 = arith.maximumf %46, %47 : vector<128x128xf32>
      %c0_22 = arith.constant 0 : index
      %c0_23 = arith.constant 0 : index
      %49 = vector.load %arg6[%c0_22, %c0_23] : memref<128x128xf32, #tpu.memory_space<vmem>>, vector<128x128xf32>
      %cst_24 = arith.constant dense<0.000000e+00> : vector<128x128xf32>
      %50 = tpu.matmul %48, %49, %cst_24 {dimension_numbers = #tpu.dot_dimension_numbers<[1], [0], [0], [1], [0, 0, 1, 1], [], []>} : vector<128x128xf32>, vector<128x128xf32>, vector<128x128xf32> -> vector<128x128xf32>
      %c0_25 = arith.constant 0 : index
      %c0_26 = arith.constant 0 : index
      %51 = vector.load %arg7[%c0_25, %c0_26] : memref<1x128xf32, #tpu.memory_space<vmem>>, vector<1x128xf32>
      %52 = vector.broadcast %51 : vector<1x128xf32> to vector<128x128xf32>
      %53 = arith.addf %50, %52 : vector<128x128xf32>
      %c0_27 = arith.constant 0 : index
      %c0_28 = arith.constant 0 : index
      %54 = vector.load %arg8[%c0_27, %c0_28] : memref<128x128xf32, #tpu.memory_space<vmem>>, vector<128x128xf32>
      tpu.vector_store %arg8[%c0_27, %c0_28], %53 {strides = array<i32>} : memref<128x128xf32, #tpu.memory_space<vmem>>, vector<128x128xf32>,
    } else {
    }
    return
  }
  func.func @transform_0(%arg0: i32, %arg1: i32) -> (i32, i32) {
    %c0_i32 = arith.constant 0 : i32
    %c0_i32_0 = arith.constant 0 : i32
    return %arg1, %c0_i32 : i32, i32
  }
  func.func @transform_1(%arg0: i32, %arg1: i32) -> (i32, i32) {
    %c0_i32 = arith.constant 0 : i32
    %c0_i32_0 = arith.constant 0 : i32
    %c0_i32_1 = arith.constant 0 : i32
    return %c0_i32, %c0_i32_0 : i32, i32
  }
  func.func @transform_2(%arg0: i32, %arg1: i32) -> (i32, i32, i32) {
    %c0_i32 = arith.constant 0 : i32
    %c0_i32_0 = arith.constant 0 : i32
    %c0_i32_1 = arith.constant 0 : i32
    %c0_i32_2 = arith.constant 0 : i32
    return %c0_i32, %c0_i32_0, %c0_i32_1 : i32, i32, i32
  }
  func.func @transform_3(%arg0: i32, %arg1: i32) -> (i32, i32) {
    %c0_i32 = arith.constant 0 : i32
    %c0_i32_0 = arith.constant 0 : i32
    %c0_i32_1 = arith.constant 0 : i32
    return %c0_i32, %c0_i32_0 : i32, i32
  }
  func.func @transform_4(%arg0: i32, %arg1: i32) -> (i32, i32) {
    %c0_i32 = arith.constant 0 : i32
    %c0_i32_0 = arith.constant 0 : i32
    %c0_i32_1 = arith.constant 0 : i32
    return %c0_i32, %c0_i32_0 : i32, i32
  }
  func.func @transform_5(%arg0: i32, %arg1: i32) -> (i32, i32) {
    %c0_i32 = arith.constant 0 : i32
    %c0_i32_0 = arith.constant 0 : i32
    %c0_i32_1 = arith.constant 0 : i32
    return %c0_i32, %c0_i32_0 : i32, i32
  }
  func.func @transform_6(%arg0: i32, %arg1: i32) -> (i32, i32) {
    %c0_i32 = arith.constant 0 : i32
    %c0_i32_0 = arith.constant 0 : i32
    return %arg1, %c0_i32 : i32, i32
  }
}

</mosaic_0001>

<llo_original>
// kernel: tpu_custom_call.1
$region0: #{tpu_custom_call.1}
  #allocation0 [shape = 'u32[]', space=smem, size = 0x4, offset = 0x4, fixed_abs, tag = 'smem constant byte address 0x4 - core index']
  #allocation1 [shape = 'u32[144,128]{1,0:T(1,128)}', space=vmem, size = 0x12000, scoped, tag = 'internal scratch']
  #allocation2 [shape = 'bf16[2,128,4]{2,1,0:T(16,128)(2,1)}', space=vmem, size = 0x10000, scoped, tag = 'scratch operand']
  %s0 = inlined_call_operand.vmem [shape: bf16[128,128], index: 0, kind: input, shape index: {}]
  %s1 = inlined_call_operand.vmem [shape: bf16[128,4], index: 1, kind: input, shape index: {}]
  %s2 = inlined_call_operand.hbm [shape: f32[3,4,256], index: 2, kind: input, shape index: {}]
  %s3 = inlined_call_operand.vmem [shape: f32[1,256], index: 3, kind: input, shape index: {}]
  %s4 = inlined_call_operand.hbm [shape: f32[128,128], index: 4, kind: input, shape index: {}]
  %s5 = inlined_call_operand.vmem [shape: f32[1,128], index: 5, kind: input, shape index: {}]
  %s6 = inlined_call_operand.hbm [shape: f32[128,128], index: 6, kind: output, shape index: {}]
  %s7 = sld [smem:[#allocation0]]
  $region73: #{tpu_custom_call.1} parent=0
    _
  %s9 = ssub.s32 1, %s7
  %s10 = scalar_select 0, %s9, %s7
  $region1: #{tpu_custom_call.1} parent=0
    #allocation3 [shape = 'u8[12288]{0}', space=vmem, size = 0x3000, scoped, tag = 'input window, operand 2, single buffered']
    #allocation4 [shape = 's32[2]{0}', space=sflag, size = 0x8, scoped, tag = 'scoped memory for tpu_custom_call.1']
    #allocation5 [shape = 's32[2]{0}', space=sflag, size = 0x8, scoped, tag = 'scoped memory for tpu_custom_call.1']
    #allocation6 [shape = 'u8[65536]{0}', space=vmem, size = 0x10000, scoped, tag = 'input window, operand 4, single buffered']
    #allocation7 [shape = 's32[1]{0}', space=sflag, size = 0x4, scoped, tag = 'scoped memory for tpu_custom_call.1']
    #allocation8 [shape = 'u8[65536]{0}', space=vmem, size = 0x10000, scoped, tag = 'output window, operand 0, single buffered']
    %11 = vsyncpa [#allocation4], 0
    %12 = vsyncpa [#allocation7], 0
    %13 = vsyncpa [#allocation5], 0
    loop: start=0, step=1, limit=4
    $region2: #{tpu_custom_call.1} parent=1 // loop_pre_header
      _
    $region3: #{tpu_custom_call.1} parent=1 // loop_header
      %s15 = sphi 0, %s19
      %p16 = scmp.ge.s32.totalorder %s15, 4
      %s22 = sphi 0, %s34
      %s23 = sphi 0, %s30
      %s24 = sphi 0, %s22
      %s25 = sphi 0, %s23
      %s26 = sphi 0, %s24
      %s27 = sphi 0, %s25
      %s37 = sphi 0, %s39
      %s40 = sphi 0, %s37
      %s41 = sphi 0, %s40
      %s57 = sphi 0, %s41
      %s61 = sphi 0, %s61
      %s63 = sphi 0, %s61
      %s64 = sphi 0, %s63
      %s78 = sphi 0, %s64
      %s82 = sphi 0, %s82
      %s84 = sphi 0, %s82
      %s85 = sphi 0, %s84
      %s99 = sphi 0, %s85
      %s103 = sphi 0, %s103
      %s105 = sphi 0, %s103
      %s106 = sphi 0, %s105
      %s120 = sphi 0, %s106
      %s124 = sphi 0, %s124
      %s126 = sphi 0, %s124
      %s127 = sphi 0, %s126
      %s141 = sphi 0, %s127
      %s145 = sphi 0, %s145
      %s147 = sphi 0, %s145
      %s148 = sphi 0, %s147
      %s162 = sphi 0, %s148
      %s168 = sphi 0, %s170
      %s171 = sphi 0, %s168
      %s172 = sphi 0, %s171
      %s188 = sphi 0, %s172
    $region4: #{tpu_custom_call.1} parent=1 // loop_header_branch
      %18 = sbr.rel (%p16) target = $region8
    $region5: #{tpu_custom_call.1} parent=1 // loop_body
      %s20 = ssub.s32 %s15, 1
      %s21 = ssub.s32 %s15, 2
      %s28 = sadd.s32 1, %s23
      %p29 = scmp.ge.s32.totalorder %s28, 1
      %s30 = scalar_select %p29, 0, %s28
      %s31 = sadd.s32 1, %s22
      %s32 = scalar_select %p29, %s31, %s22
      %p33 = scmp.ge.s32.totalorder %s32, 2
      %s34 = scalar_select %p33, 0, %s32
      %s35 = ssub.s32 %s23, %s30
      %p36 = scmp.eq.s32.totalorder %s35, 0
      %s38 = sadd.s32 %s37, 1
      %s39 = scalar_select %p36, %s37, %s38
      %p42 = pneg %p36
      %p43 = scmp.eq.s32.totalorder %s15, 1
      %p44 = por %p42, %p43
      %p45 = scmp.ne.s32.totalorder %s37, %s40
      %p46 = scmp.eq.s32.totalorder %s15, 0
      %p47 = por %p45, %p46
      %p48 = scmp.ne.s32.totalorder %s37, %s40
      %p49 = scmp.eq.s32.totalorder %s20, 1
      %p50 = por %p48, %p49
      %p51 = scmp.ne.s32.totalorder %s40, %s41
      %p52 = scmp.eq.s32.totalorder %s20, 0
      %p53 = por %p51, %p52
      %p54 = scmp.ne.s32.totalorder %s40, %s41
      %p55 = scmp.eq.s32.totalorder %s21, 1
      %p56 = por %p54, %p55
      %p58 = scmp.ne.s32.totalorder %s41, %s57
      %p59 = scmp.eq.s32.totalorder %s21, 0
      %p60 = por %p58, %p59
      %s62 = sadd.s32 %s61, 1
      %p65 = scmp.eq.s32.totalorder %s15, 1
      %p66 = scmp.ne.s32.totalorder %s61, %s63
      %p67 = scmp.eq.s32.totalorder %s15, 0
      %p68 = por %p66, %p67
      %p69 = scmp.ne.s32.totalorder %s61, %s63
      %p70 = scmp.eq.s32.totalorder %s20, 1
      %p71 = por %p69, %p70
      %p72 = scmp.ne.s32.totalorder %s63, %s64
      %p73 = scmp.eq.s32.totalorder %s20, 0
      %p74 = por %p72, %p73
      %p75 = scmp.ne.s32.totalorder %s63, %s64
      %p76 = scmp.eq.s32.totalorder %s21, 1
      %p77 = por %p75, %p76
      %p79 = scmp.ne.s32.totalorder %s64, %s78
      %p80 = scmp.eq.s32.totalorder %s21, 0
      %p81 = por %p79, %p80
      %s83 = sadd.s32 %s82, 1
      %p86 = scmp.eq.s32.totalorder %s15, 1
      %p87 = scmp.ne.s32.totalorder %s82, %s84
      %p88 = scmp.eq.s32.totalorder %s15, 0
      %p89 = por %p87, %p88
      %p90 = scmp.ne.s32.totalorder %s82, %s84
      %p91 = scmp.eq.s32.totalorder %s20, 1
      %p92 = por %p90, %p91
      %p93 = scmp.ne.s32.totalorder %s84, %s85
      %p94 = scmp.eq.s32.totalorder %s20, 0
      %p95 = por %p93, %p94
      %p96 = scmp.ne.s32.totalorder %s84, %s85
      %p97 = scmp.eq.s32.totalorder %s21, 1
      %p98 = por %p96, %p97
      %p100 = scmp.ne.s32.totalorder %s85, %s99
      %p101 = scmp.eq.s32.totalorder %s21, 0
      %p102 = por %p100, %p101
      %s104 = sadd.s32 %s103, 1
      %p107 = scmp.eq.s32.totalorder %s15, 1
      %p108 = scmp.ne.s32.totalorder %s103, %s105
      %p109 = scmp.eq.s32.totalorder %s15, 0
      %p110 = por %p108, %p109
      %p111 = scmp.ne.s32.totalorder %s103, %s105
      %p112 = scmp.eq.s32.totalorder %s20, 1
      %p113 = por %p111, %p112
      %p114 = scmp.ne.s32.totalorder %s105, %s106
      %p115 = scmp.eq.s32.totalorder %s20, 0
      %p116 = por %p114, %p115
      %p117 = scmp.ne.s32.totalorder %s105, %s106
      %p118 = scmp.eq.s32.totalorder %s21, 1
      %p119 = por %p117, %p118
      %p121 = scmp.ne.s32.totalorder %s106, %s120
      %p122 = scmp.eq.s32.totalorder %s21, 0
      %p123 = por %p121, %p122
      %s125 = sadd.s32 %s124, 1
      %p128 = scmp.eq.s32.totalorder %s15, 1
      %p129 = scmp.ne.s32.totalorder %s124, %s126
      %p130 = scmp.eq.s32.totalorder %s15, 0
      %p131 = por %p129, %p130
      %p132 = scmp.ne.s32.totalorder %s124, %s126
      %p133 = scmp.eq.s32.totalorder %s20, 1
      %p134 = por %p132, %p133
      %p135 = scmp.ne.s32.totalorder %s126, %s127
      %p136 = scmp.eq.s32.totalorder %s20, 0
      %p137 = por %p135, %p136
      %p138 = scmp.ne.s32.totalorder %s126, %s127
      %p139 = scmp.eq.s32.totalorder %s21, 1
      %p140 = por %p138, %p139
      %p142 = scmp.ne.s32.totalorder %s127, %s141
      %p143 = scmp.eq.s32.totalorder %s21, 0
      %p144 = por %p142, %p143
      %s146 = sadd.s32 %s145, 1
      %p149 = scmp.eq.s32.totalorder %s15, 1
      %p150 = scmp.ne.s32.totalorder %s145, %s147
      %p151 = scmp.eq.s32.totalorder %s15, 0
      %p152 = por %p150, %p151
      %p153 = scmp.ne.s32.totalorder %s145, %s147
      %p154 = scmp.eq.s32.totalorder %s20, 1
      %p155 = por %p153, %p154
      %p156 = scmp.ne.s32.totalorder %s147, %s148
      %p157 = scmp.eq.s32.totalorder %s20, 0
      %p158 = por %p156, %p157
      %p159 = scmp.ne.s32.totalorder %s147, %s148
      %p160 = scmp.eq.s32.totalorder %s21, 1
      %p161 = por %p159, %p160
      %p163 = scmp.ne.s32.totalorder %s148, %s162
      %p164 = scmp.eq.s32.totalorder %s21, 0
      %p165 = por %p163, %p164
      %s166 = ssub.s32 %s23, %s30
      %p167 = scmp.eq.s32.totalorder %s166, 0
      %s169 = sadd.s32 %s168, 1
      %s170 = scalar_select %p167, %s168, %s169
      %p173 = pneg %p167
      %p174 = scmp.eq.s32.totalorder %s15, 1
      %p175 = por %p173, %p174
      %p176 = scmp.ne.s32.totalorder %s168, %s171
      %p177 = scmp.eq.s32.totalorder %s15, 0
      %p178 = por %p176, %p177
      %p179 = scmp.ne.s32.totalorder %s168, %s171
      %p180 = scmp.eq.s32.totalorder %s20, 1
      %p181 = por %p179, %p180
      %p182 = scmp.ne.s32.totalorder %s171, %s172
      %p183 = scmp.eq.s32.totalorder %s20, 0
      %p184 = por %p182, %p183
      %p185 = scmp.ne.s32.totalorder %s171, %s172
      %p186 = scmp.eq.s32.totalorder %s21, 1
      %p187 = por %p185, %p186
      %p189 = scmp.ne.s32.totalorder %s172, %s188
      %p190 = scmp.eq.s32.totalorder %s21, 0
      %p191 = por %p189, %p190
      %p192 = scmp.le.s32.totalorder 1, %s15
      %p193 = scmp.lt.s32.totalorder %s15, 3
      %p194 = pnand %p192, %p193
      %p195 = pneg %p194
      // Predicated region
      $region9: #{tpu_custom_call.1} parent=5 // pred_check
        _
      $region10: #{tpu_custom_call.1} parent=5 // pred_check_branch
        %197 = sbr.rel (%p194) target = $region12
      $region11: #{tpu_custom_call.1} parent=5 // pred_region
        %s198 = ssub.s32 %s15, 1
        // Predicated region
        $region13: #{tpu_custom_call.1} parent=11 // pred_check
          %p199 = pneg %p53
        $region14: #{tpu_custom_call.1} parent=11 // pred_check_branch
          %201 = sbr.rel (%p199) target = $region16
        $region15: #{tpu_custom_call.1} parent=11 // pred_region
          %s202 = smul.u32 16, %s25
          %p203 = scmp.lt.s32.totalorder %s202, 15
          %s204 = scalar_select %p203, %s202, 15
          %s205 = smul.addr %s204, 4
          %s206 = scalar_lea.vmem %s0, %s205
          %s207 = smul.u32 16, %s25
        $region16: #{tpu_custom_call.1} parent=11 // pred_fallthru
          _
        // Predicated region
        $region17: #{tpu_custom_call.1} parent=11 // pred_check
          %p208 = pneg %p74
        $region18: #{tpu_custom_call.1} parent=11 // pred_check_branch
          %210 = sbr.rel (%p208) target = $region20
        $region19: #{tpu_custom_call.1} parent=11 // pred_region
          _
        $region20: #{tpu_custom_call.1} parent=11 // pred_fallthru
          _
        // Predicated region
        $region21: #{tpu_custom_call.1} parent=11 // pred_check
          %p211 = pneg %p95
        $region22: #{tpu_custom_call.1} parent=11 // pred_check_branch
          %213 = sbr.rel (%p211) target = $region24
        $region23: #{tpu_custom_call.1} parent=11 // pred_region
          %s215 = ssub.s32 384, 384
          %216 = vsyncadd [#allocation4], %s215
          %s217 = sshll.u32 [#allocation3], 4
          %s218 = int_to_ptr.vmem [resolvable:$true] %s217
          %223 = dma.hbm_to_vmem [thread:$0]  %s2, 384, %s218, [#allocation4], 128, 128, 8
        $region24: #{tpu_custom_call.1} parent=11 // pred_fallthru
          _
        // Predicated region
        $region25: #{tpu_custom_call.1} parent=11 // pred_check
          %p224 = pneg %p116
        $region26: #{tpu_custom_call.1} parent=11 // pred_check_branch
          %226 = sbr.rel (%p224) target = $region28
        $region27: #{tpu_custom_call.1} parent=11 // pred_region
          _
        $region28: #{tpu_custom_call.1} parent=11 // pred_fallthru
          _
        // Predicated region
        $region29: #{tpu_custom_call.1} parent=11 // pred_check
          %p227 = pneg %p137
        $region30: #{tpu_custom_call.1} parent=11 // pred_check_branch
          %229 = sbr.rel (%p227) target = $region32
        $region31: #{tpu_custom_call.1} parent=11 // pred_region
          %s231 = ssub.s32 2048, 2048
          %232 = vsyncadd [#allocation7], %s231
          %s233 = sshll.u32 [#allocation6], 4
          %s234 = int_to_ptr.vmem [resolvable:$true] %s233
          %239 = dma.hbm_to_vmem [thread:$0]  %s4, 2048, %s234, [#allocation7], 128, 128, 8
        $region32: #{tpu_custom_call.1} parent=11 // pred_fallthru
          _
        // Predicated region
        $region33: #{tpu_custom_call.1} parent=11 // pred_check
          %p240 = pneg %p158
        $region34: #{tpu_custom_call.1} parent=11 // pred_check_branch
          %242 = sbr.rel (%p240) target = $region36
        $region35: #{tpu_custom_call.1} parent=11 // pred_region
          _
        $region36: #{tpu_custom_call.1} parent=11 // pred_fallthru
          _
      $region12: #{tpu_custom_call.1} parent=5 // pred_fallthru
        _
      %p243 = scmp.lt.s32.totalorder %s15, 2
      // Predicated region
      $region37: #{tpu_custom_call.1} parent=5 // pred_check
        %p244 = pneg %p243
      $region38: #{tpu_custom_call.1} parent=5 // pred_check_branch
        %246 = sbr.rel (%p244) target = $region40
      $region39: #{tpu_custom_call.1} parent=5 // pred_region
        _
      $region40: #{tpu_custom_call.1} parent=5 // pred_fallthru
        _
      %p247 = scmp.le.s32.totalorder 1, %s15
      %p248 = scmp.lt.s32.totalorder %s15, 3
      %p249 = pnand %p247, %p248
      %p250 = pneg %p249
      // Predicated region
      $region41: #{tpu_custom_call.1} parent=5 // pred_check
        _
      $region42: #{tpu_custom_call.1} parent=5 // pred_check_branch
        %252 = sbr.rel (%p249) target = $region44
      $region43: #{tpu_custom_call.1} parent=5 // pred_region
        %s253 = ssub.s32 %s15, 1
        // Predicated region
        $region45: #{tpu_custom_call.1} parent=43 // pred_check
          %p254 = pneg %p95
        $region46: #{tpu_custom_call.1} parent=43 // pred_check_branch
          %256 = sbr.rel (%p254) target = $region48
        $region47: #{tpu_custom_call.1} parent=43 // pred_region
          %257 = dma.done [#allocation4], 384
        $region48: #{tpu_custom_call.1} parent=43 // pred_fallthru
          _
        // Predicated region
        $region49: #{tpu_custom_call.1} parent=43 // pred_check
          %p258 = pneg %p137
        $region50: #{tpu_custom_call.1} parent=43 // pred_check_branch
          %260 = sbr.rel (%p258) target = $region52
        $region51: #{tpu_custom_call.1} parent=43 // pred_region
          %261 = dma.done [#allocation7], 2048
        $region52: #{tpu_custom_call.1} parent=43 // pred_fallthru
          _
        %s262 = smul.u32 16, %s25
        %p263 = scmp.lt.s32.totalorder %s262, 15
        %s264 = scalar_select %p263, %s262, 15
        %s265 = smul.addr %s264, 4
        %s266 = scalar_lea.vmem %s0, %s265
        %p267 = pneg %p53
        %p268 = pneg %p50
        %p269 = pneg %p74
        %p270 = pneg %p71
        %p271 = pneg %p95
        %p272 = pneg %p92
        %p273 = pneg %p116
        %p274 = pneg %p113
        %p275 = pneg %p137
        %p276 = pneg %p134
        %p277 = pneg %p158
        %p278 = pneg %p155
        %p279 = pneg %p184
        %p280 = pneg %p181
        %s281 = smul.u32 16, %s25
        %p282 = scmp.lt.s32.totalorder %s281, 15
        %s283 = scalar_select %p282, %s281, 15
        %s284 = smul.addr %s283, 4
        %s285 = scalar_lea.vmem %s0, %s284
        %s286 = smul.u32 16, %s25
        %s287 = smul.u32 16, %s25
        %s289 = smul.u32 %s25, 128
        %p290 = scmp.eq.s32.totalorder %s24, 0
        // Predicated region
        $region53: #{tpu_custom_call.1} parent=43 // pred_check
          %p291 = pneg %p290
        $region54: #{tpu_custom_call.1} parent=43 // pred_check_branch
          %293 = sbr.rel (%p291) target = $region56
        $region55: #{tpu_custom_call.1} parent=43 // pred_region
          %v294 = vld [vmem:[%s285] sm:$0xf]
          %v295 = vld [vmem:[%s285 + $0x4] sm:$0xf]
          %v296 = vld [vmem:[%s285 + $0x8] sm:$0xf]
          %v297 = vld [vmem:[%s285 + $0xc] sm:$0xf]
          %v298 = vld [vmem:[%s285 + $0x10] sm:$0xf]
          %v299 = vld [vmem:[%s285 + $0x14] sm:$0xf]
          %v300 = vld [vmem:[%s285 + $0x18] sm:$0xf]
          %v301 = vld [vmem:[%s285 + $0x1c] sm:$0xf]
          %v302 = vld [vmem:[%s285 + $0x20] sm:$0xf]
          %v303 = vld [vmem:[%s285 + $0x24] sm:$0xf]
          %v304 = vld [vmem:[%s285 + $0x28] sm:$0xf]
          %v305 = vld [vmem:[%s285 + $0x2c] sm:$0xf]
          %v306 = vld [vmem:[%s285 + $0x30] sm:$0xf]
          %v307 = vld [vmem:[%s285 + $0x34] sm:$0xf]
          %v308 = vld [vmem:[%s285 + $0x38] sm:$0xf]
          %v309 = vld [vmem:[%s285 + $0x3c] sm:$0xf]
          %v310 = vld [vmem:[%s1] sm:$0xf]
          %v311 = vld [vmem:[%s1 + $0x4] sm:$0xf]
          %v312 = vld [vmem:[%s1 + $0x8] sm:$0xf]
          %v313 = vld [vmem:[%s1 + $0xc] sm:$0xf]
          %v314 = vld [vmem:[%s1 + $0x10] sm:$0xf]
          %v315 = vld [vmem:[%s1 + $0x14] sm:$0xf]
          %v316 = vld [vmem:[%s1 + $0x18] sm:$0xf]
          %v317 = vld [vmem:[%s1 + $0x1c] sm:$0xf]
          %v318 = vld [vmem:[%s1 + $0x20] sm:$0xf]
          %v319 = vld [vmem:[%s1 + $0x24] sm:$0xf]
          %v320 = vld [vmem:[%s1 + $0x28] sm:$0xf]
          %v321 = vld [vmem:[%s1 + $0x2c] sm:$0xf]
          %v322 = vld [vmem:[%s1 + $0x30] sm:$0xf]
          %v323 = vld [vmem:[%s1 + $0x34] sm:$0xf]
          %v324 = vld [vmem:[%s1 + $0x38] sm:$0xf]
          %v325 = vld [vmem:[%s1 + $0x3c] sm:$0xf]
          %v342 = vunpack.c.l.b16 %v294
          %v343 = vunpack.c.l.b16 %v295
          %v344 = vunpack.c.l.b16 %v296
          %v345 = vunpack.c.l.b16 %v297
          %v346 = vunpack.c.l.b16 %v298
          %v347 = vunpack.c.l.b16 %v299
          %v348 = vunpack.c.l.b16 %v300
          %v349 = vunpack.c.l.b16 %v301
          %v350 = vunpack.c.l.b16 %v302
          %v351 = vunpack.c.l.b16 %v303
          %v352 = vunpack.c.l.b16 %v304
          %v353 = vunpack.c.l.b16 %v305
          %v354 = vunpack.c.l.b16 %v306
          %v355 = vunpack.c.l.b16 %v307
          %v356 = vunpack.c.l.b16 %v308
          %v357 = vunpack.c.l.b16 %v309
          %v358 = vpack.c.b16 %v343, %v342
          %v359 = vpack.c.b16 %v345, %v344
          %v360 = vpack.c.b16 %v347, %v346
          %v361 = vpack.c.b16 %v349, %v348
          %v362 = vpack.c.b16 %v351, %v350
          %v363 = vpack.c.b16 %v353, %v352
          %v364 = vpack.c.b16 %v355, %v354
          %v365 = vpack.c.b16 %v357, %v356
          %v390 = vunpack.c.l.b16 %v310
          %v391 = vunpack.c.l.b16 %v311
          %v392 = vunpack.c.l.b16 %v312
          %v393 = vunpack.c.l.b16 %v313
          %v394 = vunpack.c.l.b16 %v314
          %v395 = vunpack.c.l.b16 %v315
          %v396 = vunpack.c.l.b16 %v316
          %v397 = vunpack.c.l.b16 %v317
          %v398 = vunpack.c.l.b16 %v318
          %v399 = vunpack.c.l.b16 %v319
          %v400 = vunpack.c.l.b16 %v320
          %v401 = vunpack.c.l.b16 %v321
          %v402 = vunpack.c.l.b16 %v322
          %v403 = vunpack.c.l.b16 %v323
          %v404 = vunpack.c.l.b16 %v324
          %v405 = vunpack.c.l.b16 %v325
          %v406 = vpack.c.b16 %v391, %v390
          %v407 = vpack.c.b16 %v393, %v392
          %v408 = vpack.c.b16 %v395, %v394
          %v409 = vpack.c.b16 %v397, %v396
          %v410 = vpack.c.b16 %v399, %v398
          %v411 = vpack.c.b16 %v401, %v400
          %v412 = vpack.c.b16 %v403, %v402
          %v413 = vpack.c.b16 %v405, %v404
          %422 = vmatprep.subr.bf16.mxu0 0
          %423 = vmatpush1.bf16.msra.mxu0 %v406
          %424 = vmatprep.subr.bf16.mxu0 0
          %425 = vmatpush1.bf16.msra.mxu0 %v407
          %426 = vmatprep.subr.bf16.mxu0 0
          %427 = vmatpush1.bf16.msra.mxu0 %v408
          %428 = vmatprep.subr.bf16.mxu0 0
          %429 = vmatpush1.bf16.msra.mxu0 %v409
          %430 = vmatprep.subr.bf16.mxu0 0
          %431 = vmatpush1.bf16.msra.mxu0 %v410
          %432 = vmatprep.subr.bf16.mxu0 0
          %433 = vmatpush1.bf16.msra.mxu0 %v411
          %434 = vmatprep.subr.bf16.mxu0 0
          %435 = vmatpush1.bf16.msra.mxu0 %v412
          %436 = vmatprep.subr.bf16.mxu0 0
          %437 = vmatpush1.bf16.msra.mxu0 %v413
          %438 = vmatprep.subr.bf16.mxu0 0
          %439 = vmatpush1.bf16.msra.mxu0 0
          %440 = vmatprep.subr.bf16.mxu0 0
          %441 = vmatpush1.bf16.msra.mxu0 0
          %442 = vmatprep.subr.bf16.mxu0 0
          %443 = vmatpush1.bf16.msra.mxu0 0
          %444 = vmatprep.subr.bf16.mxu0 0
          %445 = vmatpush1.bf16.msra.mxu0 0
          %446 = vmatprep.subr.bf16.mxu0 0
          %447 = vmatpush1.bf16.msra.mxu0 0
          %448 = vmatprep.subr.bf16.mxu0 0
          %449 = vmatpush1.bf16.msra.mxu0 0
          %450 = vmatprep.subr.bf16.mxu0 0
          %451 = vmatpush1.bf16.msra.mxu0 0
          %452 = vmatprep.subr.bf16.mxu0 0
          %453 = vmatpush1.bf16.msra.mxu0 0
          %454 = vmatprep.mubr.bf16.mxu0 0
          %455 = vmatmul.mubr.bf16.gmra.mrb[0].mxu0 %v358
          %v456 = vpop.f32.mrb[0].mxu0
          %v457 = vadd.f32 0.0, %v456
          %v458 = vpop.f32.mrb[0].mxu0
          %v459 = vpop.f32.mrb[0].mxu0
          %v460 = vadd.f32 0.0, %v459
          %v461 = vpop.f32.mrb[0].mxu0
          %462 = vmatprep.mubr.bf16.mxu0 0
          %463 = vmatmul.mubr.bf16.gmra.mrb[0].mxu0 %v359
          %v464 = vpop.f32.mrb[0].mxu0
          %v465 = vadd.f32 0.0, %v464
          %v466 = vpop.f32.mrb[0].mxu0
          %v467 = vpop.f32.mrb[0].mxu0
          %v468 = vadd.f32 0.0, %v467
          %v469 = vpop.f32.mrb[0].mxu0
          %470 = vmatprep.mubr.bf16.mxu0 0
          %471 = vmatmul.mubr.bf16.gmra.mrb[0].mxu0 %v360
          %v472 = vpop.f32.mrb[0].mxu0
          %v473 = vadd.f32 0.0, %v472
          %v474 = vpop.f32.mrb[0].mxu0
          %v475 = vpop.f32.mrb[0].mxu0
          %v476 = vadd.f32 0.0, %v475
          %v477 = vpop.f32.mrb[0].mxu0
          %478 = vmatprep.mubr.bf16.mxu0 0
          %479 = vmatmul.mubr.bf16.gmra.mrb[0].mxu0 %v361
          %v480 = vpop.f32.mrb[0].mxu0
          %v481 = vadd.f32 0.0, %v480
          %v482 = vpop.f32.mrb[0].mxu0
          %v483 = vpop.f32.mrb[0].mxu0
          %v484 = vadd.f32 0.0, %v483
          %v485 = vpop.f32.mrb[0].mxu0
          %486 = vmatprep.mubr.bf16.mxu0 0
          %487 = vmatmul.mubr.bf16.gmra.mrb[0].mxu0 %v362
          %v488 = vpop.f32.mrb[0].mxu0
          %v489 = vadd.f32 0.0, %v488
          %v490 = vpop.f32.mrb[0].mxu0
          %v491 = vpop.f32.mrb[0].mxu0
          %v492 = vadd.f32 0.0, %v491
          %v493 = vpop.f32.mrb[0].mxu0
          %494 = vmatprep.mubr.bf16.mxu0 0
          %495 = vmatmul.mubr.bf16.gmra.mrb[0].mxu0 %v363
          %v496 = vpop.f32.mrb[0].mxu0
          %v497 = vadd.f32 0.0, %v496
          %v498 = vpop.f32.mrb[0].mxu0
          %v499 = vpop.f32.mrb[0].mxu0
          %v500 = vadd.f32 0.0, %v499
          %v501 = vpop.f32.mrb[0].mxu0
          %502 = vmatprep.mubr.bf16.mxu0 0
          %503 = vmatmul.mubr.bf16.gmra.mrb[0].mxu0 %v364
          %v504 = vpop.f32.mrb[0].mxu0
          %v505 = vadd.f32 0.0, %v504
          %v506 = vpop.f32.mrb[0].mxu0
          %v507 = vpop.f32.mrb[0].mxu0
          %v508 = vadd.f32 0.0, %v507
          %v509 = vpop.f32.mrb[0].mxu0
          %510 = vmatprep.mubr.bf16.mxu0 0
          %511 = vmatmul.mubr.bf16.gmra.mrb[0].mxu0 %v365
          %v512 = vpop.f32.mrb[0].mxu0
          %v513 = vadd.f32 0.0, %v512
          %v514 = vpop.f32.mrb[0].mxu0
          %v515 = vpop.f32.mrb[0].mxu0
          %v516 = vadd.f32 0.0, %v515
          %v517 = vpop.f32.mrb[0].mxu0
          %518 = vdwg.mxu0
          %v519 = vpack.c.bf16 %v460, %v457
          %v520 = vpack.c.bf16 %v468, %v465
          %v521 = vpack.c.bf16 %v476, %v473
          %v522 = vpack.c.bf16 %v484, %v481
          %v523 = vpack.c.bf16 %v492, %v489
          %v524 = vpack.c.bf16 %v500, %v497
          %v525 = vpack.c.bf16 %v508, %v505
          %v526 = vpack.c.bf16 %v516, %v513
          %s527 = sshra.s32 %s289, 4
          %s528 = sand.u32 %s289, 15
          %s529 = smul.addr %s527, 8
          %s530 = scalar_lea.vmem [#allocation2], %s529
          %vm531 = vcmask 31744
          %532 = vst.msk [vmem:[%s530] sm:$0xff] %vm531, %v519
          %533 = vst.msk [vmem:[%s530 + $0x8] sm:$0xff] %vm531, %v520
          %534 = vst.msk [vmem:[%s530 + $0x10] sm:$0xff] %vm531, %v521
          %535 = vst.msk [vmem:[%s530 + $0x18] sm:$0xff] %vm531, %v522
          %536 = vst.msk [vmem:[%s530 + $0x20] sm:$0xff] %vm531, %v523
          %537 = vst.msk [vmem:[%s530 + $0x28] sm:$0xff] %vm531, %v524
          %538 = vst.msk [vmem:[%s530 + $0x30] sm:$0xff] %vm531, %v525
          %539 = vst.msk [vmem:[%s530 + $0x38] sm:$0xff] %vm531, %v526
        $region56: #{tpu_custom_call.1} parent=43 // pred_fallthru
          _
        %p540 = scmp.eq.s32.totalorder %s24, 1
        // Predicated region
        $region57: #{tpu_custom_call.1} parent=43 // pred_check
          %p541 = pneg %p540
        $region58: #{tpu_custom_call.1} parent=43 // pred_check_branch
          %543 = sbr.rel (%p541) target = $region60
        $region59: #{tpu_custom_call.1} parent=43 // pred_region
          %v544 = vld [vmem:[%s285] sm:$0xf]
          %v545 = vld [vmem:[%s285 + $0x4] sm:$0xf]
          %v546 = vld [vmem:[%s285 + $0x8] sm:$0xf]
          %v547 = vld [vmem:[%s285 + $0xc] sm:$0xf]
          %v548 = vld [vmem:[%s285 + $0x10] sm:$0xf]
          %v549 = vld [vmem:[%s285 + $0x14] sm:$0xf]
          %v550 = vld [vmem:[%s285 + $0x18] sm:$0xf]
          %v551 = vld [vmem:[%s285 + $0x1c] sm:$0xf]
          %v552 = vld [vmem:[%s285 + $0x20] sm:$0xf]
          %v553 = vld [vmem:[%s285 + $0x24] sm:$0xf]
          %v554 = vld [vmem:[%s285 + $0x28] sm:$0xf]
          %v555 = vld [vmem:[%s285 + $0x2c] sm:$0xf]
          %v556 = vld [vmem:[%s285 + $0x30] sm:$0xf]
          %v557 = vld [vmem:[%s285 + $0x34] sm:$0xf]
          %v558 = vld [vmem:[%s285 + $0x38] sm:$0xf]
          %v559 = vld [vmem:[%s285 + $0x3c] sm:$0xf]
          %v560 = vld [vmem:[#allocation2] sm:$0xff]
          %v561 = vld [vmem:[#allocation2 + $0x8] sm:$0xff]
          %v562 = vld [vmem:[#allocation2 + $0x10] sm:$0xff]
          %v563 = vld [vmem:[#allocation2 + $0x18] sm:$0xff]
          %v564 = vld [vmem:[#allocation2 + $0x20] sm:$0xff]
          %v565 = vld [vmem:[#allocation2 + $0x28] sm:$0xff]
          %v566 = vld [vmem:[#allocation2 + $0x30] sm:$0xff]
          %v567 = vld [vmem:[#allocation2 + $0x38] sm:$0xff]
          %s568 = sshra.s32 %s289, 3
          %s569 = sand.u32 %s289, 7
          %s570 = smul.addr %s568, 4
          %s571 = scalar_lea.vmem %s1, %s570
          %v572 = vld [vmem:[%s571] sm:$0xf]
          %v573 = vld [vmem:[%s571 + $0x4] sm:$0xf]
          %v574 = vld [vmem:[%s571 + $0x8] sm:$0xf]
          %v575 = vld [vmem:[%s571 + $0xc] sm:$0xf]
          %v576 = vld [vmem:[%s571 + $0x10] sm:$0xf]
          %v577 = vld [vmem:[%s571 + $0x14] sm:$0xf]
          %v578 = vld [vmem:[%s571 + $0x18] sm:$0xf]
          %v579 = vld [vmem:[%s571 + $0x1c] sm:$0xf]
          %v580 = vld [vmem:[%s571 + $0x20] sm:$0xf]
          %v581 = vld [vmem:[%s571 + $0x24] sm:$0xf]
          %v582 = vld [vmem:[%s571 + $0x28] sm:$0xf]
          %v583 = vld [vmem:[%s571 + $0x2c] sm:$0xf]
          %v584 = vld [vmem:[%s571 + $0x30] sm:$0xf]
          %v585 = vld [vmem:[%s571 + $0x34] sm:$0xf]
          %v586 = vld [vmem:[%s571 + $0x38] sm:$0xf]
          %v587 = vld [vmem:[%s571 + $0x3c] sm:$0xf]
          %v604 = vunpack.c.l.b16 %v544
          %v605 = vunpack.c.l.b16 %v545
          %v606 = vunpack.c.l.b16 %v546
          %v607 = vunpack.c.l.b16 %v547
          %v608 = vunpack.c.l.b16 %v548
          %v609 = vunpack.c.l.b16 %v549
          %v610 = vunpack.c.l.b16 %v550
          %v611 = vunpack.c.l.b16 %v551
          %v612 = vunpack.c.l.b16 %v552
          %v613 = vunpack.c.l.b16 %v553
          %v614 = vunpack.c.l.b16 %v554
          %v615 = vunpack.c.l.b16 %v555
          %v616 = vunpack.c.l.b16 %v556
          %v617 = vunpack.c.l.b16 %v557
          %v618 = vunpack.c.l.b16 %v558
          %v619 = vunpack.c.l.b16 %v559
          %v620 = vpack.c.b16 %v605, %v604
          %v621 = vpack.c.b16 %v607, %v606
          %v622 = vpack.c.b16 %v609, %v608
          %v623 = vpack.c.b16 %v611, %v610
          %v624 = vpack.c.b16 %v613, %v612
          %v625 = vpack.c.b16 %v615, %v614
          %v626 = vpack.c.b16 %v617, %v616
          %v627 = vpack.c.b16 %v619, %v618
          %636 = vmatprep.subr.bf16.mxu0 0
          %637 = vmatpush1.bf16.msra.mxu0 %v560
          %638 = vmatprep.subr.bf16.mxu0 0
          %639 = vmatpush1.bf16.msra.mxu0 %v561
          %640 = vmatprep.subr.bf16.mxu0 0
          %641 = vmatpush1.bf16.msra.mxu0 %v562
          %642 = vmatprep.subr.bf16.mxu0 0
          %643 = vmatpush1.bf16.msra.mxu0 %v563
          %644 = vmatprep.subr.bf16.mxu0 0
          %645 = vmatpush1.bf16.msra.mxu0 %v564
          %646 = vmatprep.subr.bf16.mxu0 0
          %647 = vmatpush1.bf16.msra.mxu0 %v565
          %648 = vmatprep.subr.bf16.mxu0 0
          %649 = vmatpush1.bf16.msra.mxu0 %v566
          %650 = vmatprep.subr.bf16.mxu0 0
          %651 = vmatpush1.bf16.msra.mxu0 %v567
          %652 = vmatprep.subr.bf16.mxu0 0
          %653 = vmatpush1.bf16.msra.mxu0 0
          %654 = vmatprep.subr.bf16.mxu0 0
          %655 = vmatpush1.bf16.msra.mxu0 0
          %656 = vmatprep.subr.bf16.mxu0 0
          %657 = vmatpush1.bf16.msra.mxu0 0
          %658 = vmatprep.subr.bf16.mxu0 0
          %659 = vmatpush1.bf16.msra.mxu0 0
          %660 = vmatprep.subr.bf16.mxu0 0
          %661 = vmatpush1.bf16.msra.mxu0 0
          %662 = vmatprep.subr.bf16.mxu0 0
          %663 = vmatpush1.bf16.msra.mxu0 0
          %664 = vmatprep.subr.bf16.mxu0 0
          %665 = vmatpush1.bf16.msra.mxu0 0
          %666 = vmatprep.subr.bf16.mxu0 0
          %667 = vmatpush1.bf16.msra.mxu0 0
          %668 = vmatprep.mubr.bf16.mxu0 0
          %669 = vmatmul.mubr.bf16.gmra.mrb[0].mxu0 %v620
          %v670 = vpop.f32.mrb[0].mxu0
          %v671 = vadd.f32 0.0, %v670
          %v672 = vpop.f32.mrb[0].mxu0
          %v673 = vpop.f32.mrb[0].mxu0
          %v674 = vadd.f32 0.0, %v673
          %v675 = vpop.f32.mrb[0].mxu0
          %676 = vmatprep.mubr.bf16.mxu0 0
          %677 = vmatmul.mubr.bf16.gmra.mrb[0].mxu0 %v621
          %v678 = vpop.f32.mrb[0].mxu0
          %v679 = vadd.f32 0.0, %v678
          %v680 = vpop.f32.mrb[0].mxu0
          %v681 = vpop.f32.mrb[0].mxu0
          %v682 = vadd.f32 0.0, %v681
          %v683 = vpop.f32.mrb[0].mxu0
          %684 = vmatprep.mubr.bf16.mxu0 0
          %685 = vmatmul.mubr.bf16.gmra.mrb[0].mxu0 %v622
          %v686 = vpop.f32.mrb[0].mxu0
          %v687 = vadd.f32 0.0, %v686
          %v688 = vpop.f32.mrb[0].mxu0
          %v689 = vpop.f32.mrb[0].mxu0
          %v690 = vadd.f32 0.0, %v689
          %v691 = vpop.f32.mrb[0].mxu0
          %692 = vmatprep.mubr.bf16.mxu0 0
          %693 = vmatmul.mubr.bf16.gmra.mrb[0].mxu0 %v623
          %v694 = vpop.f32.mrb[0].mxu0
          %v695 = vadd.f32 0.0, %v694
          %v696 = vpop.f32.mrb[0].mxu0
          %v697 = vpop.f32.mrb[0].mxu0
          %v698 = vadd.f32 0.0, %v697
          %v699 = vpop.f32.mrb[0].mxu0
          %700 = vmatprep.mubr.bf16.mxu0 0
          %701 = vmatmul.mubr.bf16.gmra.mrb[0].mxu0 %v624
          %v702 = vpop.f32.mrb[0].mxu0
          %v703 = vadd.f32 0.0, %v702
          %v704 = vpop.f32.mrb[0].mxu0
          %v705 = vpop.f32.mrb[0].mxu0
          %v706 = vadd.f32 0.0, %v705
          %v707 = vpop.f32.mrb[0].mxu0
          %708 = vmatprep.mubr.bf16.mxu0 0
          %709 = vmatmul.mubr.bf16.gmra.mrb[0].mxu0 %v625
          %v710 = vpop.f32.mrb[0].mxu0
          %v711 = vadd.f32 0.0, %v710
          %v712 = vpop.f32.mrb[0].mxu0
          %v713 = vpop.f32.mrb[0].mxu0
          %v714 = vadd.f32 0.0, %v713
          %v715 = vpop.f32.mrb[0].mxu0
          %716 = vmatprep.mubr.bf16.mxu0 0
          %717 = vmatmul.mubr.bf16.gmra.mrb[0].mxu0 %v626
          %v718 = vpop.f32.mrb[0].mxu0
          %v719 = vadd.f32 0.0, %v718
          %v720 = vpop.f32.mrb[0].mxu0
          %v721 = vpop.f32.mrb[0].mxu0
          %v722 = vadd.f32 0.0, %v721
          %v723 = vpop.f32.mrb[0].mxu0
          %724 = vmatprep.mubr.bf16.mxu0 0
          %725 = vmatmul.mubr.bf16.gmra.mrb[0].mxu0 %v627
          %v726 = vpop.f32.mrb[0].mxu0
          %v727 = vadd.f32 0.0, %v726
          %v728 = vpop.f32.mrb[0].mxu0
          %v729 = vpop.f32.mrb[0].mxu0
          %v730 = vadd.f32 0.0, %v729
          %v731 = vpop.f32.mrb[0].mxu0
          %732 = vdwg.mxu0
          %v733 = vmul.f32 %v671, 2.0
          %v734 = vmul.f32 %v674, 2.0
          %v735 = vmul.f32 %v679, 2.0
          %v736 = vmul.f32 %v682, 2.0
          %v737 = vmul.f32 %v687, 2.0
          %v738 = vmul.f32 %v690, 2.0
          %v739 = vmul.f32 %v695, 2.0
          %v740 = vmul.f32 %v698, 2.0
          %v741 = vmul.f32 %v703, 2.0
          %v742 = vmul.f32 %v706, 2.0
          %v743 = vmul.f32 %v711, 2.0
          %v744 = vmul.f32 %v714, 2.0
          %v745 = vmul.f32 %v719, 2.0
          %v746 = vmul.f32 %v722, 2.0
          %v747 = vmul.f32 %v727, 2.0
          %v748 = vmul.f32 %v730, 2.0
          %v749 = vunpack.c.l.bf16 %v572
          %v750 = vunpack.c.l.bf16 %v573
          %v751 = vunpack.c.l.bf16 %v574
          %v752 = vunpack.c.l.bf16 %v575
          %v753 = vunpack.c.l.bf16 %v576
          %v754 = vunpack.c.l.bf16 %v577
          %v755 = vunpack.c.l.bf16 %v578
          %v756 = vunpack.c.l.bf16 %v579
          %v757 = vunpack.c.l.bf16 %v580
          %v758 = vunpack.c.l.bf16 %v581
          %v759 = vunpack.c.l.bf16 %v582
          %v760 = vunpack.c.l.bf16 %v583
          %v761 = vunpack.c.l.bf16 %v584
          %v762 = vunpack.c.l.bf16 %v585
          %v763 = vunpack.c.l.bf16 %v586
          %v764 = vunpack.c.l.bf16 %v587
          %v765 = vsub.f32 %v733, %v749
          %v766 = vsub.f32 %v734, %v750
          %v767 = vsub.f32 %v735, %v751
          %v768 = vsub.f32 %v736, %v752
          %v769 = vsub.f32 %v737, %v753
          %v770 = vsub.f32 %v738, %v754
          %v771 = vsub.f32 %v739, %v755
          %v772 = vsub.f32 %v740, %v756
          %v773 = vsub.f32 %v741, %v757
          %v774 = vsub.f32 %v742, %v758
          %v775 = vsub.f32 %v743, %v759
          %v776 = vsub.f32 %v744, %v760
          %v777 = vsub.f32 %v745, %v761
          %v778 = vsub.f32 %v746, %v762
          %v779 = vsub.f32 %v747, %v763
          %v780 = vsub.f32 %v748, %v764
          %v781 = vpack.c.bf16 %v766, %v765
          %v782 = vpack.c.bf16 %v768, %v767
          %v783 = vpack.c.bf16 %v770, %v769
          %v784 = vpack.c.bf16 %v772, %v771
          %v785 = vpack.c.bf16 %v774, %v773
          %v786 = vpack.c.bf16 %v776, %v775
          %v787 = vpack.c.bf16 %v778, %v777
          %v788 = vpack.c.bf16 %v780, %v779
          %s789 = sshra.s32 %s289, 4
          %s790 = sand.u32 %s289, 15
          %s791 = sadd.s32 %s789, 8
          %s792 = smul.addr %s791, 8
          %s793 = scalar_lea.vmem [#allocation2], %s792
          %vm794 = vcmask 31744
          %795 = vst.msk [vmem:[%s793] sm:$0xff] %vm794, %v781
          %796 = vst.msk [vmem:[%s793 + $0x8] sm:$0xff] %vm794, %v782
          %797 = vst.msk [vmem:[%s793 + $0x10] sm:$0xff] %vm794, %v783
          %798 = vst.msk [vmem:[%s793 + $0x18] sm:$0xff] %vm794, %v784
          %799 = vst.msk [vmem:[%s793 + $0x20] sm:$0xff] %vm794, %v785
          %800 = vst.msk [vmem:[%s793 + $0x28] sm:$0xff] %vm794, %v786
          %801 = vst.msk [vmem:[%s793 + $0x30] sm:$0xff] %vm794, %v787
          %802 = vst.msk [vmem:[%s793 + $0x38] sm:$0xff] %vm794, %v788
          %v803 = vld [vmem:[%s571] sm:$0xf]
          %v804 = vld [vmem:[%s571 + $0x4] sm:$0xf]
          %v805 = vld [vmem:[%s571 + $0x8] sm:$0xf]
          %v806 = vld [vmem:[%s571 + $0xc] sm:$0xf]
          %v807 = vld [vmem:[%s571 + $0x10] sm:$0xf]
          %v808 = vld [vmem:[%s571 + $0x14] sm:$0xf]
          %v809 = vld [vmem:[%s571 + $0x18] sm:$0xf]
          %v810 = vld [vmem:[%s571 + $0x1c] sm:$0xf]
          %v811 = vld [vmem:[%s571 + $0x20] sm:$0xf]
          %v812 = vld [vmem:[%s571 + $0x24] sm:$0xf]
          %v813 = vld [vmem:[%s571 + $0x28] sm:$0xf]
          %v814 = vld [vmem:[%s571 + $0x2c] sm:$0xf]
          %v815 = vld [vmem:[%s571 + $0x30] sm:$0xf]
          %v816 = vld [vmem:[%s571 + $0x34] sm:$0xf]
          %v817 = vld [vmem:[%s571 + $0x38] sm:$0xf]
          %v818 = vld [vmem:[%s571 + $0x3c] sm:$0xf]
          %v819 = vunpack.c.l.bf16 %v803
          %v820 = vunpack.c.l.bf16 %v804
          %v821 = vunpack.c.l.bf16 %v805
          %v822 = vunpack.c.l.bf16 %v806
          %v823 = vunpack.c.l.bf16 %v807
          %v824 = vunpack.c.l.bf16 %v808
          %v825 = vunpack.c.l.bf16 %v809
          %v826 = vunpack.c.l.bf16 %v810
          %v827 = vunpack.c.l.bf16 %v811
          %v828 = vunpack.c.l.bf16 %v812
          %v829 = vunpack.c.l.bf16 %v813
          %v830 = vunpack.c.l.bf16 %v814
          %v831 = vunpack.c.l.bf16 %v815
          %v832 = vunpack.c.l.bf16 %v816
          %v833 = vunpack.c.l.bf16 %v817
          %v834 = vunpack.c.l.bf16 %v818
          %v835 = vld [vmem:[#allocation3] sm:$0xff]
          %s836 = smul.addr %s789, 8
          %s837 = scalar_lea.vmem [#allocation2], %s836
          %v838 = vld [vmem:[%s837] sm:$0xff]
          %v839 = vld [vmem:[%s837 + $0x8] sm:$0xff]
          %v840 = vld [vmem:[%s837 + $0x10] sm:$0xff]
          %v841 = vld [vmem:[%s837 + $0x18] sm:$0xff]
          %v842 = vld [vmem:[%s837 + $0x20] sm:$0xff]
          %v843 = vld [vmem:[%s837 + $0x28] sm:$0xff]
          %v844 = vld [vmem:[%s837 + $0x30] sm:$0xff]
          %v845 = vld [vmem:[%s837 + $0x38] sm:$0xff]
          %v846 = vunpack.c.l.bf16 %v838
          %v847 = vunpack.c.h.bf16 %v838
          %v848 = vunpack.c.l.bf16 %v839
          %v849 = vunpack.c.h.bf16 %v839
          %v850 = vunpack.c.l.bf16 %v840
          %v851 = vunpack.c.h.bf16 %v840
          %v852 = vunpack.c.l.bf16 %v841
          %v853 = vunpack.c.h.bf16 %v841
          %v854 = vunpack.c.l.bf16 %v842
          %v855 = vunpack.c.h.bf16 %v842
          %v856 = vunpack.c.l.bf16 %v843
          %v857 = vunpack.c.h.bf16 %v843
          %v858 = vunpack.c.l.bf16 %v844
          %v859 = vunpack.c.h.bf16 %v844
          %v860 = vunpack.c.l.bf16 %v845
          %v861 = vunpack.c.h.bf16 %v845
          %s862 = scalar_lea.vmem [#allocation3], 8
          %v863 = vld [vmem:[%s862] sm:$0xff]
          %v865 = vcombine.high %v863, %v863
          %v867 = vsel %vm794, %v846, 0
          %v870 = vsel %vm794, %v847, 0
          %v873 = vsel %vm794, %v848, 0
          %v876 = vsel %vm794, %v849, 0
          %v879 = vsel %vm794, %v850, 0
          %v882 = vsel %vm794, %v851, 0
          %v885 = vsel %vm794, %v852, 0
          %v888 = vsel %vm794, %v853, 0
          %v891 = vsel %vm794, %v854, 0
          %v894 = vsel %vm794, %v855, 0
          %v897 = vsel %vm794, %v856, 0
          %v900 = vsel %vm794, %v857, 0
          %v903 = vsel %vm794, %v858, 0
          %v906 = vsel %vm794, %v859, 0
          %v909 = vsel %vm794, %v860, 0
          %v912 = vsel %vm794, %v861, 0
          %vm914 = vcmask 1043456
          %v915 = vsel %vm914, %v863, 0
          %v917 = vsel %vm914, %v865, 0
          %919 = vmatprep.subr.mxu0 %v917
          %920 = vmatpush1.msra.mxu0 %v915
          %921 = vmatprep.subr.mxu0 0.0
          %922 = vmatpush1.msra.mxu0 0.0
          %923 = vmatprep.subr.mxu0 0.0
          %924 = vmatpush1.msra.mxu0 0.0
          %925 = vmatprep.subr.mxu0 0.0
          %926 = vmatpush1.msra.mxu0 0.0
          %927 = vmatprep.subr.mxu0 0.0
          %928 = vmatpush1.msra.mxu0 0.0
          %929 = vmatprep.subr.mxu0 0.0
          %930 = vmatpush1.msra.mxu0 0.0
          %931 = vmatprep.subr.mxu0 0.0
          %932 = vmatpush1.msra.mxu0 0.0
          %933 = vmatprep.subr.mxu0 0.0
          %934 = vmatpush1.msra.mxu0 0.0
          %935 = vmatprep.subr.mxu0 0.0
          %936 = vmatpush1.msra.mxu0 0.0
          %937 = vmatprep.subr.mxu0 0.0
          %938 = vmatpush1.msra.mxu0 0.0
          %939 = vmatprep.subr.mxu0 0.0
          %940 = vmatpush1.msra.mxu0 0.0
          %941 = vmatprep.subr.mxu0 0.0
          %942 = vmatpush1.msra.mxu0 0.0
          %943 = vmatprep.subr.mxu0 0.0
          %944 = vmatpush1.msra.mxu0 0.0
          %945 = vmatprep.subr.mxu0 0.0
          %946 = vmatpush1.msra.mxu0 0.0
          %947 = vmatprep.subr.mxu0 0.0
          %948 = vmatpush1.msra.mxu0 0.0
          %949 = vmatprep.subr.mxu0 0.0
          %950 = vmatpush1.msra.mxu0 0.0
          %951 = vmatprep.subr.mxu0 0.0
          %952 = vmatpush1.msra.mxu0 0.0
          %953 = vmatprep.subr.mxu0 0.0
          %954 = vmatpush1.msra.mxu0 0.0
          %955 = vmatprep.subr.mxu0 0.0
          %956 = vmatpush1.msra.mxu0 0.0
          %957 = vmatprep.subr.mxu0 0.0
          %958 = vmatpush1.msra.mxu0 0.0
          %959 = vmatprep.subr.mxu0 0.0
          %960 = vmatpush1.msra.mxu0 0.0
          %961 = vmatprep.subr.mxu0 0.0
          %962 = vmatpush1.msra.mxu0 0.0
          %963 = vmatprep.subr.mxu0 0.0
          %964 = vmatpush1.msra.mxu0 0.0
          %965 = vmatprep.subr.mxu0 0.0
          %966 = vmatpush1.msra.mxu0 0.0
          %967 = vmatprep.subr.mxu0 0.0
          %968 = vmatpush1.msra.mxu0 0.0
          %969 = vmatprep.subr.mxu0 0.0
          %970 = vmatpush1.msra.mxu0 0.0
          %971 = vmatprep.subr.mxu0 0.0
          %972 = vmatpush1.msra.mxu0 0.0
          %973 = vmatprep.subr.mxu0 0.0
          %974 = vmatpush1.msra.mxu0 0.0
          %975 = vmatprep.subr.mxu0 0.0
          %976 = vmatpush1.msra.mxu0 0.0
          %977 = vmatprep.subr.mxu0 0.0
          %978 = vmatpush1.msra.mxu0 0.0
          %979 = vmatprep.subr.mxu0 0.0
          %980 = vmatpush1.msra.mxu0 0.0
          %981 = vmatprep.subr.mxu0 0.0
          %982 = vmatpush1.msra.mxu0 0.0
          %983 = vmatprep.mubr.f32.mxu0 0.0
          %984 = vmatmul.mubr.f32.gmra.mrb[0].mxu0 %v867
          %v985 = vpop.f32.mrb[0].mxu0
          %v986 = vadd.f32 0.0, %v985
          %v987 = vpop.f32.mrb[0].mxu0
          %v988 = vadd.f32 0.0, %v987
          %989 = vmatprep.mubr.f32.mxu0 0.0
          %990 = vmatmul.mubr.f32.gmra.mrb[0].mxu0 %v870
          %v991 = vpop.f32.mrb[0].mxu0
          %v992 = vadd.f32 0.0, %v991
          %v993 = vpop.f32.mrb[0].mxu0
          %v994 = vadd.f32 0.0, %v993
          %995 = vmatprep.mubr.f32.mxu0 0.0
          %996 = vmatmul.mubr.f32.gmra.mrb[0].mxu0 %v873
          %v997 = vpop.f32.mrb[0].mxu0
          %v998 = vadd.f32 0.0, %v997
          %v999 = vpop.f32.mrb[0].mxu0
          %v1000 = vadd.f32 0.0, %v999
          %1001 = vmatprep.mubr.f32.mxu0 0.0
          %1002 = vmatmul.mubr.f32.gmra.mrb[0].mxu0 %v876
          %v1003 = vpop.f32.mrb[0].mxu0
          %v1004 = vadd.f32 0.0, %v1003
          %v1005 = vpop.f32.mrb[0].mxu0
          %v1006 = vadd.f32 0.0, %v1005
          %1007 = vmatprep.mubr.f32.mxu0 0.0
          %1008 = vmatmul.mubr.f32.gmra.mrb[0].mxu0 %v879
          %v1009 = vpop.f32.mrb[0].mxu0
          %v1010 = vadd.f32 0.0, %v1009
          %v1011 = vpop.f32.mrb[0].mxu0
          %v1012 = vadd.f32 0.0, %v1011
          %1013 = vmatprep.mubr.f32.mxu0 0.0
          %1014 = vmatmul.mubr.f32.gmra.mrb[0].mxu0 %v882
          %v1015 = vpop.f32.mrb[0].mxu0
          %v1016 = vadd.f32 0.0, %v1015
          %v1017 = vpop.f32.mrb[0].mxu0
          %v1018 = vadd.f32 0.0, %v1017
          %1019 = vmatprep.mubr.f32.mxu0 0.0
          %1020 = vmatmul.mubr.f32.gmra.mrb[0].mxu0 %v885
          %v1021 = vpop.f32.mrb[0].mxu0
          %v1022 = vadd.f32 0.0, %v1021
          %v1023 = vpop.f32.mrb[0].mxu0
          %v1024 = vadd.f32 0.0, %v1023
          %1025 = vmatprep.mubr.f32.mxu0 0.0
          %1026 = vmatmul.mubr.f32.gmra.mrb[0].mxu0 %v888
          %v1027 = vpop.f32.mrb[0].mxu0
          %v1028 = vadd.f32 0.0, %v1027
          %v1029 = vpop.f32.mrb[0].mxu0
          %v1030 = vadd.f32 0.0, %v1029
          %1031 = vmatprep.mubr.f32.mxu0 0.0
          %1032 = vmatmul.mubr.f32.gmra.mrb[0].mxu0 %v891
          %v1033 = vpop.f32.mrb[0].mxu0
          %v1034 = vadd.f32 0.0, %v1033
          %v1035 = vpop.f32.mrb[0].mxu0
          %v1036 = vadd.f32 0.0, %v1035
          %1037 = vmatprep.mubr.f32.mxu0 0.0
          %1038 = vmatmul.mubr.f32.gmra.mrb[0].mxu0 %v894
          %v1039 = vpop.f32.mrb[0].mxu0
          %v1040 = vadd.f32 0.0, %v1039
          %v1041 = vpop.f32.mrb[0].mxu0
          %v1042 = vadd.f32 0.0, %v1041
          %1043 = vmatprep.mubr.f32.mxu0 0.0
          %1044 = vmatmul.mubr.f32.gmra.mrb[0].mxu0 %v897
          %v1045 = vpop.f32.mrb[0].mxu0
          %v1046 = vadd.f32 0.0, %v1045
          %v1047 = vpop.f32.mrb[0].mxu0
          %v1048 = vadd.f32 0.0, %v1047
          %1049 = vmatprep.mubr.f32.mxu0 0.0
          %1050 = vmatmul.mubr.f32.gmra.mrb[0].mxu0 %v900
          %v1051 = vpop.f32.mrb[0].mxu0
          %v1052 = vadd.f32 0.0, %v1051
          %v1053 = vpop.f32.mrb[0].mxu0
          %v1054 = vadd.f32 0.0, %v1053
          %1055 = vmatprep.mubr.f32.mxu0 0.0
          %1056 = vmatmul.mubr.f32.gmra.mrb[0].mxu0 %v903
          %v1057 = vpop.f32.mrb[0].mxu0
          %v1058 = vadd.f32 0.0, %v1057
          %v1059 = vpop.f32.mrb[0].mxu0
          %v1060 = vadd.f32 0.0, %v1059
          %1061 = vmatprep.mubr.f32.mxu0 0.0
          %1062 = vmatmul.mubr.f32.gmra.mrb[0].mxu0 %v906
          %v1063 = vpop.f32.mrb[0].mxu0
          %v1064 = vadd.f32 0.0, %v1063
          %v1065 = vpop.f32.mrb[0].mxu0
          %v1066 = vadd.f32 0.0, %v1065
          %1067 = vmatprep.mubr.f32.mxu0 0.0
          %1068 = vmatmul.mubr.f32.gmra.mrb[0].mxu0 %v909
          %v1069 = vpop.f32.mrb[0].mxu0
          %v1070 = vadd.f32 0.0, %v1069
          %v1071 = vpop.f32.mrb[0].mxu0
          %v1072 = vadd.f32 0.0, %v1071
          %1073 = vmatprep.mubr.f32.mxu0 0.0
          %1074 = vmatmul.mubr.f32.gmra.mrb[0].mxu0 %v912
          %v1075 = vpop.f32.mrb[0].mxu0
          %v1076 = vadd.f32 0.0, %v1075
          %v1077 = vpop.f32.mrb[0].mxu0
          %v1078 = vadd.f32 0.0, %v1077
          %1079 = vdwg.mxu0
          %v1081 = vcombine.high %v835, %v835
          %v1083 = vsel %vm794, %v819, 0
          %v1086 = vsel %vm794, %v820, 0
          %v1089 = vsel %vm794, %v821, 0
          %v1092 = vsel %vm794, %v822, 0
          %v1095 = vsel %vm794, %v823, 0
          %v1098 = vsel %vm794, %v824, 0
          %v1101 = vsel %vm794, %v825, 0
          %v1104 = vsel %vm794, %v826, 0
          %v1107 = vsel %vm794, %v827, 0
          %v1110 = vsel %vm794, %v828, 0
          %v1113 = vsel %vm794, %v829, 0
          %v1116 = vsel %vm794, %v830, 0
          %v1119 = vsel %vm794, %v831, 0
          %v1122 = vsel %vm794, %v832, 0
          %v1125 = vsel %vm794, %v833, 0
          %v1128 = vsel %vm794, %v834, 0
          %v1130 = vsel %vm914, %v835, 0
          %v1132 = vsel %vm914, %v1081, 0
          %1134 = vmatprep.subr.mxu0 %v1132
          %1135 = vmatpush1.msra.mxu0 %v1130
          %1136 = vmatprep.subr.mxu0 0.0
          %1137 = vmatpush1.msra.mxu0 0.0
          %1138 = vmatprep.subr.mxu0 0.0
          %1139 = vmatpush1.msra.mxu0 0.0
          %1140 = vmatprep.subr.mxu0 0.0
          %1141 = vmatpush1.msra.mxu0 0.0
          %1142 = vmatprep.subr.mxu0 0.0
          %1143 = vmatpush1.msra.mxu0 0.0
          %1144 = vmatprep.subr.mxu0 0.0
          %1145 = vmatpush1.msra.mxu0 0.0
          %1146 = vmatprep.subr.mxu0 0.0
          %1147 = vmatpush1.msra.mxu0 0.0
          %1148 = vmatprep.subr.mxu0 0.0
          %1149 = vmatpush1.msra.mxu0 0.0
          %1150 = vmatprep.subr.mxu0 0.0
          %1151 = vmatpush1.msra.mxu0 0.0
          %1152 = vmatprep.subr.mxu0 0.0
          %1153 = vmatpush1.msra.mxu0 0.0
          %1154 = vmatprep.subr.mxu0 0.0
          %1155 = vmatpush1.msra.mxu0 0.0
          %1156 = vmatprep.subr.mxu0 0.0
          %1157 = vmatpush1.msra.mxu0 0.0
          %1158 = vmatprep.subr.mxu0 0.0
          %1159 = vmatpush1.msra.mxu0 0.0
          %1160 = vmatprep.subr.mxu0 0.0
          %1161 = vmatpush1.msra.mxu0 0.0
          %1162 = vmatprep.subr.mxu0 0.0
          %1163 = vmatpush1.msra.mxu0 0.0
          %1164 = vmatprep.subr.mxu0 0.0
          %1165 = vmatpush1.msra.mxu0 0.0
          %1166 = vmatprep.subr.mxu0 0.0
          %1167 = vmatpush1.msra.mxu0 0.0
          %1168 = vmatprep.subr.mxu0 0.0
          %1169 = vmatpush1.msra.mxu0 0.0
          %1170 = vmatprep.subr.mxu0 0.0
          %1171 = vmatpush1.msra.mxu0 0.0
          %1172 = vmatprep.subr.mxu0 0.0
          %1173 = vmatpush1.msra.mxu0 0.0
          %1174 = vmatprep.subr.mxu0 0.0
          %1175 = vmatpush1.msra.mxu0 0.0
          %1176 = vmatprep.subr.mxu0 0.0
          %1177 = vmatpush1.msra.mxu0 0.0
          %1178 = vmatprep.subr.mxu0 0.0
          %1179 = vmatpush1.msra.mxu0 0.0
          %1180 = vmatprep.subr.mxu0 0.0
          %1181 = vmatpush1.msra.mxu0 0.0
          %1182 = vmatprep.subr.mxu0 0.0
          %1183 = vmatpush1.msra.mxu0 0.0
          %1184 = vmatprep.subr.mxu0 0.0
          %1185 = vmatpush1.msra.mxu0 0.0
          %1186 = vmatprep.subr.mxu0 0.0
          %1187 = vmatpush1.msra.mxu0 0.0
          %1188 = vmatprep.subr.mxu0 0.0
          %1189 = vmatpush1.msra.mxu0 0.0
          %1190 = vmatprep.subr.mxu0 0.0
          %1191 = vmatpush1.msra.mxu0 0.0
          %1192 = vmatprep.subr.mxu0 0.0
          %1193 = vmatpush1.msra.mxu0 0.0
          %1194 = vmatprep.subr.mxu0 0.0
          %1195 = vmatpush1.msra.mxu0 0.0
          %1196 = vmatprep.subr.mxu0 0.0
          %1197 = vmatpush1.msra.mxu0 0.0
          %1198 = vmatprep.mubr.f32.mxu0 0.0
          %1199 = vmatmul.mubr.f32.gmra.mrb[0].mxu0 %v1083
          %v1200 = vpop.f32.mrb[0].mxu0
          %v1201 = vadd.f32 %v986, %v1200
          %v1202 = vpop.f32.mrb[0].mxu0
          %v1203 = vadd.f32 %v988, %v1202
          %1204 = vmatprep.mubr.f32.mxu0 0.0
          %1205 = vmatmul.mubr.f32.gmra.mrb[0].mxu0 %v1086
          %v1206 = vpop.f32.mrb[0].mxu0
          %v1207 = vadd.f32 %v992, %v1206
          %v1208 = vpop.f32.mrb[0].mxu0
          %v1209 = vadd.f32 %v994, %v1208
          %1210 = vmatprep.mubr.f32.mxu0 0.0
          %1211 = vmatmul.mubr.f32.gmra.mrb[0].mxu0 %v1089
          %v1212 = vpop.f32.mrb[0].mxu0
          %v1213 = vadd.f32 %v998, %v1212
          %v1214 = vpop.f32.mrb[0].mxu0
          %v1215 = vadd.f32 %v1000, %v1214
          %1216 = vmatprep.mubr.f32.mxu0 0.0
          %1217 = vmatmul.mubr.f32.gmra.mrb[0].mxu0 %v1092
          %v1218 = vpop.f32.mrb[0].mxu0
          %v1219 = vadd.f32 %v1004, %v1218
          %v1220 = vpop.f32.mrb[0].mxu0
          %v1221 = vadd.f32 %v1006, %v1220
          %1222 = vmatprep.mubr.f32.mxu0 0.0
          %1223 = vmatmul.mubr.f32.gmra.mrb[0].mxu0 %v1095
          %v1224 = vpop.f32.mrb[0].mxu0
          %v1225 = vadd.f32 %v1010, %v1224
          %v1226 = vpop.f32.mrb[0].mxu0
          %v1227 = vadd.f32 %v1012, %v1226
          %1228 = vmatprep.mubr.f32.mxu0 0.0
          %1229 = vmatmul.mubr.f32.gmra.mrb[0].mxu0 %v1098
          %v1230 = vpop.f32.mrb[0].mxu0
          %v1231 = vadd.f32 %v1016, %v1230
          %v1232 = vpop.f32.mrb[0].mxu0
          %v1233 = vadd.f32 %v1018, %v1232
          %1234 = vmatprep.mubr.f32.mxu0 0.0
          %1235 = vmatmul.mubr.f32.gmra.mrb[0].mxu0 %v1101
          %v1236 = vpop.f32.mrb[0].mxu0
          %v1237 = vadd.f32 %v1022, %v1236
          %v1238 = vpop.f32.mrb[0].mxu0
          %v1239 = vadd.f32 %v1024, %v1238
          %1240 = vmatprep.mubr.f32.mxu0 0.0
          %1241 = vmatmul.mubr.f32.gmra.mrb[0].mxu0 %v1104
          %v1242 = vpop.f32.mrb[0].mxu0
          %v1243 = vadd.f32 %v1028, %v1242
          %v1244 = vpop.f32.mrb[0].mxu0
          %v1245 = vadd.f32 %v1030, %v1244
          %1246 = vmatprep.mubr.f32.mxu0 0.0
          %1247 = vmatmul.mubr.f32.gmra.mrb[0].mxu0 %v1107
          %v1248 = vpop.f32.mrb[0].mxu0
          %v1249 = vadd.f32 %v1034, %v1248
          %v1250 = vpop.f32.mrb[0].mxu0
          %v1251 = vadd.f32 %v1036, %v1250
          %1252 = vmatprep.mubr.f32.mxu0 0.0
          %1253 = vmatmul.mubr.f32.gmra.mrb[0].mxu0 %v1110
          %v1254 = vpop.f32.mrb[0].mxu0
          %v1255 = vadd.f32 %v1040, %v1254
          %v1256 = vpop.f32.mrb[0].mxu0
          %v1257 = vadd.f32 %v1042, %v1256
          %1258 = vmatprep.mubr.f32.mxu0 0.0
          %1259 = vmatmul.mubr.f32.gmra.mrb[0].mxu0 %v1113
          %v1260 = vpop.f32.mrb[0].mxu0
          %v1261 = vadd.f32 %v1046, %v1260
          %v1262 = vpop.f32.mrb[0].mxu0
          %v1263 = vadd.f32 %v1048, %v1262
          %1264 = vmatprep.mubr.f32.mxu0 0.0
          %1265 = vmatmul.mubr.f32.gmra.mrb[0].mxu0 %v1116
          %v1266 = vpop.f32.mrb[0].mxu0
          %v1267 = vadd.f32 %v1052, %v1266
          %v1268 = vpop.f32.mrb[0].mxu0
          %v1269 = vadd.f32 %v1054, %v1268
          %1270 = vmatprep.mubr.f32.mxu0 0.0
          %1271 = vmatmul.mubr.f32.gmra.mrb[0].mxu0 %v1119
          %v1272 = vpop.f32.mrb[0].mxu0
          %v1273 = vadd.f32 %v1058, %v1272
          %v1274 = vpop.f32.mrb[0].mxu0
          %v1275 = vadd.f32 %v1060, %v1274
          %1276 = vmatprep.mubr.f32.mxu0 0.0
          %1277 = vmatmul.mubr.f32.gmra.mrb[0].mxu0 %v1122
          %v1278 = vpop.f32.mrb[0].mxu0
          %v1279 = vadd.f32 %v1064, %v1278
          %v1280 = vpop.f32.mrb[0].mxu0
          %v1281 = vadd.f32 %v1066, %v1280
          %1282 = vmatprep.mubr.f32.mxu0 0.0
          %1283 = vmatmul.mubr.f32.gmra.mrb[0].mxu0 %v1125
          %v1284 = vpop.f32.mrb[0].mxu0
          %v1285 = vadd.f32 %v1070, %v1284
          %v1286 = vpop.f32.mrb[0].mxu0
          %v1287 = vadd.f32 %v1072, %v1286
          %1288 = vmatprep.mubr.f32.mxu0 0.0
          %1289 = vmatmul.mubr.f32.gmra.mrb[0].mxu0 %v1128
          %v1290 = vpop.f32.mrb[0].mxu0
          %v1291 = vadd.f32 %v1076, %v1290
          %v1292 = vpop.f32.mrb[0].mxu0
          %v1293 = vadd.f32 %v1078, %v1292
          %1294 = vdwg.mxu0
          %v1295 = vld [vmem:[%s793] sm:$0xff]
          %v1296 = vld [vmem:[%s793 + $0x8] sm:$0xff]
          %v1297 = vld [vmem:[%s793 + $0x10] sm:$0xff]
          %v1298 = vld [vmem:[%s793 + $0x18] sm:$0xff]
          %v1299 = vld [vmem:[%s793 + $0x20] sm:$0xff]
          %v1300 = vld [vmem:[%s793 + $0x28] sm:$0xff]
          %v1301 = vld [vmem:[%s793 + $0x30] sm:$0xff]
          %v1302 = vld [vmem:[%s793 + $0x38] sm:$0xff]
          %v1303 = vunpack.c.l.bf16 %v1295
          %v1304 = vunpack.c.h.bf16 %v1295
          %v1305 = vunpack.c.l.bf16 %v1296
          %v1306 = vunpack.c.h.bf16 %v1296
          %v1307 = vunpack.c.l.bf16 %v1297
          %v1308 = vunpack.c.h.bf16 %v1297
          %v1309 = vunpack.c.l.bf16 %v1298
          %v1310 = vunpack.c.h.bf16 %v1298
          %v1311 = vunpack.c.l.bf16 %v1299
          %v1312 = vunpack.c.h.bf16 %v1299
          %v1313 = vunpack.c.l.bf16 %v1300
          %v1314 = vunpack.c.h.bf16 %v1300
          %v1315 = vunpack.c.l.bf16 %v1301
          %v1316 = vunpack.c.h.bf16 %v1301
          %v1317 = vunpack.c.l.bf16 %v1302
          %v1318 = vunpack.c.h.bf16 %v1302
          %s1319 = scalar_lea.vmem [#allocation3], 16
          %v1320 = vld [vmem:[%s1319] sm:$0xff]
          %v1322 = vcombine.high %v1320, %v1320
          %v1324 = vsel %vm794, %v1303, 0
          %v1327 = vsel %vm794, %v1304, 0
          %v1330 = vsel %vm794, %v1305, 0
          %v1333 = vsel %vm794, %v1306, 0
          %v1336 = vsel %vm794, %v1307, 0
          %v1339 = vsel %vm794, %v1308, 0
          %v1342 = vsel %vm794, %v1309, 0
          %v1345 = vsel %vm794, %v1310, 0
          %v1348 = vsel %vm794, %v1311, 0
          %v1351 = vsel %vm794, %v1312, 0
          %v1354 = vsel %vm794, %v1313, 0
          %v1357 = vsel %vm794, %v1314, 0
          %v1360 = vsel %vm794, %v1315, 0
          %v1363 = vsel %vm794, %v1316, 0
          %v1366 = vsel %vm794, %v1317, 0
          %v1369 = vsel %vm794, %v1318, 0
          %v1371 = vsel %vm914, %v1320, 0
          %v1373 = vsel %vm914, %v1322, 0
          %1375 = vmatprep.subr.mxu0 %v1373
          %1376 = vmatpush1.msra.mxu0 %v1371
          %1377 = vmatprep.subr.mxu0 0.0
          %1378 = vmatpush1.msra.mxu0 0.0
          %1379 = vmatprep.subr.mxu0 0.0
          %1380 = vmatpush1.msra.mxu0 0.0
          %1381 = vmatprep.subr.mxu0 0.0
          %1382 = vmatpush1.msra.mxu0 0.0
          %1383 = vmatprep.subr.mxu0 0.0
          %1384 = vmatpush1.msra.mxu0 0.0
          %1385 = vmatprep.subr.mxu0 0.0
          %1386 = vmatpush1.msra.mxu0 0.0
          %1387 = vmatprep.subr.mxu0 0.0
          %1388 = vmatpush1.msra.mxu0 0.0
          %1389 = vmatprep.subr.mxu0 0.0
          %1390 = vmatpush1.msra.mxu0 0.0
          %1391 = vmatprep.subr.mxu0 0.0
          %1392 = vmatpush1.msra.mxu0 0.0
          %1393 = vmatprep.subr.mxu0 0.0
          %1394 = vmatpush1.msra.mxu0 0.0
          %1395 = vmatprep.subr.mxu0 0.0
          %1396 = vmatpush1.msra.mxu0 0.0
          %1397 = vmatprep.subr.mxu0 0.0
          %1398 = vmatpush1.msra.mxu0 0.0
          %1399 = vmatprep.subr.mxu0 0.0
          %1400 = vmatpush1.msra.mxu0 0.0
          %1401 = vmatprep.subr.mxu0 0.0
          %1402 = vmatpush1.msra.mxu0 0.0
          %1403 = vmatprep.subr.mxu0 0.0
          %1404 = vmatpush1.msra.mxu0 0.0
          %1405 = vmatprep.subr.mxu0 0.0
          %1406 = vmatpush1.msra.mxu0 0.0
          %1407 = vmatprep.subr.mxu0 0.0
          %1408 = vmatpush1.msra.mxu0 0.0
          %1409 = vmatprep.subr.mxu0 0.0
          %1410 = vmatpush1.msra.mxu0 0.0
          %1411 = vmatprep.subr.mxu0 0.0
          %1412 = vmatpush1.msra.mxu0 0.0
          %1413 = vmatprep.subr.mxu0 0.0
          %1414 = vmatpush1.msra.mxu0 0.0
          %1415 = vmatprep.subr.mxu0 0.0
          %1416 = vmatpush1.msra.mxu0 0.0
          %1417 = vmatprep.subr.mxu0 0.0
          %1418 = vmatpush1.msra.mxu0 0.0
          %1419 = vmatprep.subr.mxu0 0.0
          %1420 = vmatpush1.msra.mxu0 0.0
          %1421 = vmatprep.subr.mxu0 0.0
          %1422 = vmatpush1.msra.mxu0 0.0
          %1423 = vmatprep.subr.mxu0 0.0
          %1424 = vmatpush1.msra.mxu0 0.0
          %1425 = vmatprep.subr.mxu0 0.0
          %1426 = vmatpush1.msra.mxu0 0.0
          %1427 = vmatprep.subr.mxu0 0.0
          %1428 = vmatpush1.msra.mxu0 0.0
          %1429 = vmatprep.subr.mxu0 0.0
          %1430 = vmatpush1.msra.mxu0 0.0
          %1431 = vmatprep.subr.mxu0 0.0
          %1432 = vmatpush1.msra.mxu0 0.0
          %1433 = vmatprep.subr.mxu0 0.0
          %1434 = vmatpush1.msra.mxu0 0.0
          %1435 = vmatprep.subr.mxu0 0.0
          %1436 = vmatpush1.msra.mxu0 0.0
          %1437 = vmatprep.subr.mxu0 0.0
          %1438 = vmatpush1.msra.mxu0 0.0
          %1439 = vmatprep.mubr.f32.mxu0 0.0
          %1440 = vmatmul.mubr.f32.gmra.mrb[0].mxu0 %v1324
          %v1441 = vpop.f32.mrb[0].mxu0
          %v1442 = vadd.f32 0.0, %v1441
          %v1443 = vpop.f32.mrb[0].mxu0
          %v1444 = vadd.f32 0.0, %v1443
          %1445 = vmatprep.mubr.f32.mxu0 0.0
          %1446 = vmatmul.mubr.f32.gmra.mrb[0].mxu0 %v1327
          %v1447 = vpop.f32.mrb[0].mxu0
          %v1448 = vadd.f32 0.0, %v1447
          %v1449 = vpop.f32.mrb[0].mxu0
          %v1450 = vadd.f32 0.0, %v1449
          %1451 = vmatprep.mubr.f32.mxu0 0.0
          %1452 = vmatmul.mubr.f32.gmra.mrb[0].mxu0 %v1330
          %v1453 = vpop.f32.mrb[0].mxu0
          %v1454 = vadd.f32 0.0, %v1453
          %v1455 = vpop.f32.mrb[0].mxu0
          %v1456 = vadd.f32 0.0, %v1455
          %1457 = vmatprep.mubr.f32.mxu0 0.0
          %1458 = vmatmul.mubr.f32.gmra.mrb[0].mxu0 %v1333
          %v1459 = vpop.f32.mrb[0].mxu0
          %v1460 = vadd.f32 0.0, %v1459
          %v1461 = vpop.f32.mrb[0].mxu0
          %v1462 = vadd.f32 0.0, %v1461
          %1463 = vmatprep.mubr.f32.mxu0 0.0
          %1464 = vmatmul.mubr.f32.gmra.mrb[0].mxu0 %v1336
          %v1465 = vpop.f32.mrb[0].mxu0
          %v1466 = vadd.f32 0.0, %v1465
          %v1467 = vpop.f32.mrb[0].mxu0
          %v1468 = vadd.f32 0.0, %v1467
          %1469 = vmatprep.mubr.f32.mxu0 0.0
          %1470 = vmatmul.mubr.f32.gmra.mrb[0].mxu0 %v1339
          %v1471 = vpop.f32.mrb[0].mxu0
          %v1472 = vadd.f32 0.0, %v1471
          %v1473 = vpop.f32.mrb[0].mxu0
          %v1474 = vadd.f32 0.0, %v1473
          %1475 = vmatprep.mubr.f32.mxu0 0.0
          %1476 = vmatmul.mubr.f32.gmra.mrb[0].mxu0 %v1342
          %v1477 = vpop.f32.mrb[0].mxu0
          %v1478 = vadd.f32 0.0, %v1477
          %v1479 = vpop.f32.mrb[0].mxu0
          %v1480 = vadd.f32 0.0, %v1479
          %1481 = vmatprep.mubr.f32.mxu0 0.0
          %1482 = vmatmul.mubr.f32.gmra.mrb[0].mxu0 %v1345
          %v1483 = vpop.f32.mrb[0].mxu0
          %v1484 = vadd.f32 0.0, %v1483
          %v1485 = vpop.f32.mrb[0].mxu0
          %v1486 = vadd.f32 0.0, %v1485
          %1487 = vmatprep.mubr.f32.mxu0 0.0
          %1488 = vmatmul.mubr.f32.gmra.mrb[0].mxu0 %v1348
          %v1489 = vpop.f32.mrb[0].mxu0
          %v1490 = vadd.f32 0.0, %v1489
          %v1491 = vpop.f32.mrb[0].mxu0
          %v1492 = vadd.f32 0.0, %v1491
          %1493 = vmatprep.mubr.f32.mxu0 0.0
          %1494 = vmatmul.mubr.f32.gmra.mrb[0].mxu0 %v1351
          %v1495 = vpop.f32.mrb[0].mxu0
          %v1496 = vadd.f32 0.0, %v1495
          %v1497 = vpop.f32.mrb[0].mxu0
          %v1498 = vadd.f32 0.0, %v1497
          %1499 = vmatprep.mubr.f32.mxu0 0.0
          %1500 = vmatmul.mubr.f32.gmra.mrb[0].mxu0 %v1354
          %v1501 = vpop.f32.mrb[0].mxu0
          %v1502 = vadd.f32 0.0, %v1501
          %v1503 = vpop.f32.mrb[0].mxu0
          %v1504 = vadd.f32 0.0, %v1503
          %1505 = vmatprep.mubr.f32.mxu0 0.0
          %1506 = vmatmul.mubr.f32.gmra.mrb[0].mxu0 %v1357
          %v1507 = vpop.f32.mrb[0].mxu0
          %v1508 = vadd.f32 0.0, %v1507
          %v1509 = vpop.f32.mrb[0].mxu0
          %v1510 = vadd.f32 0.0, %v1509
          %1511 = vmatprep.mubr.f32.mxu0 0.0
          %1512 = vmatmul.mubr.f32.gmra.mrb[0].mxu0 %v1360
          %v1513 = vpop.f32.mrb[0].mxu0
          %v1514 = vadd.f32 0.0, %v1513
          %v1515 = vpop.f32.mrb[0].mxu0
          %v1516 = vadd.f32 0.0, %v1515
          %1517 = vmatprep.mubr.f32.mxu0 0.0
          %1518 = vmatmul.mubr.f32.gmra.mrb[0].mxu0 %v1363
          %v1519 = vpop.f32.mrb[0].mxu0
          %v1520 = vadd.f32 0.0, %v1519
          %v1521 = vpop.f32.mrb[0].mxu0
          %v1522 = vadd.f32 0.0, %v1521
          %1523 = vmatprep.mubr.f32.mxu0 0.0
          %1524 = vmatmul.mubr.f32.gmra.mrb[0].mxu0 %v1366
          %v1525 = vpop.f32.mrb[0].mxu0
          %v1526 = vadd.f32 0.0, %v1525
          %v1527 = vpop.f32.mrb[0].mxu0
          %v1528 = vadd.f32 0.0, %v1527
          %1529 = vmatprep.mubr.f32.mxu0 0.0
          %1530 = vmatmul.mubr.f32.gmra.mrb[0].mxu0 %v1369
          %v1531 = vpop.f32.mrb[0].mxu0
          %v1532 = vadd.f32 0.0, %v1531
          %v1533 = vpop.f32.mrb[0].mxu0
          %v1534 = vadd.f32 0.0, %v1533
          %1535 = vdwg.mxu0
          %v1536 = vadd.f32 %v1201, %v1442
          %v1537 = vadd.f32 %v1203, %v1444
          %v1538 = vadd.f32 %v1207, %v1448
          %v1539 = vadd.f32 %v1209, %v1450
          %v1540 = vadd.f32 %v1213, %v1454
          %v1541 = vadd.f32 %v1215, %v1456
          %v1542 = vadd.f32 %v1219, %v1460
          %v1543 = vadd.f32 %v1221, %v1462
          %v1544 = vadd.f32 %v1225, %v1466
          %v1545 = vadd.f32 %v1227, %v1468
          %v1546 = vadd.f32 %v1231, %v1472
          %v1547 = vadd.f32 %v1233, %v1474
          %v1548 = vadd.f32 %v1237, %v1478
          %v1549 = vadd.f32 %v1239, %v1480
          %v1550 = vadd.f32 %v1243, %v1484
          %v1551 = vadd.f32 %v1245, %v1486
          %v1552 = vadd.f32 %v1249, %v1490
          %v1553 = vadd.f32 %v1251, %v1492
          %v1554 = vadd.f32 %v1255, %v1496
          %v1555 = vadd.f32 %v1257, %v1498
          %v1556 = vadd.f32 %v1261, %v1502
          %v1557 = vadd.f32 %v1263, %v1504
          %v1558 = vadd.f32 %v1267, %v1508
          %v1559 = vadd.f32 %v1269, %v1510
          %v1560 = vadd.f32 %v1273, %v1514
          %v1561 = vadd.f32 %v1275, %v1516
          %v1562 = vadd.f32 %v1279, %v1520
          %v1563 = vadd.f32 %v1281, %v1522
          %v1564 = vadd.f32 %v1285, %v1526
          %v1565 = vadd.f32 %v1287, %v1528
          %v1566 = vadd.f32 %v1291, %v1532
          %v1567 = vadd.f32 %v1293, %v1534
          %v1568 = vld [vmem:[%s3] sm:$0x3]
          %v1570 = vlaneseq
          %v1571 = vshrl.u32 %v1570, 7
          %v1572 = vsub.s32 0, %v1571
          %v1573 = vrot.slane %v1568, %v1572
          %v1574 = vlaneseq
          %v1575 = vshrl.u32 %v1574, 7
          %v1576 = vsub.s32 1, %v1575
          %v1577 = vrot.slane %v1568, %v1576
          %v1580 = vadd.f32 %v1536, %v1573
          %v1581 = vadd.f32 %v1537, %v1577
          %v1582 = vadd.f32 %v1538, %v1573
          %v1583 = vadd.f32 %v1539, %v1577
          %v1584 = vadd.f32 %v1540, %v1573
          %v1585 = vadd.f32 %v1541, %v1577
          %v1586 = vadd.f32 %v1542, %v1573
          %v1587 = vadd.f32 %v1543, %v1577
          %v1588 = vadd.f32 %v1544, %v1573
          %v1589 = vadd.f32 %v1545, %v1577
          %v1590 = vadd.f32 %v1546, %v1573
          %v1591 = vadd.f32 %v1547, %v1577
          %v1592 = vadd.f32 %v1548, %v1573
          %v1593 = vadd.f32 %v1549, %v1577
          %v1594 = vadd.f32 %v1550, %v1573
          %v1595 = vadd.f32 %v1551, %v1577
          %v1596 = vadd.f32 %v1552, %v1573
          %v1597 = vadd.f32 %v1553, %v1577
          %v1598 = vadd.f32 %v1554, %v1573
          %v1599 = vadd.f32 %v1555, %v1577
          %v1600 = vadd.f32 %v1556, %v1573
          %v1601 = vadd.f32 %v1557, %v1577
          %v1602 = vadd.f32 %v1558, %v1573
          %v1603 = vadd.f32 %v1559, %v1577
          %v1604 = vadd.f32 %v1560, %v1573
          %v1605 = vadd.f32 %v1561, %v1577
          %v1606 = vadd.f32 %v1562, %v1573
          %v1607 = vadd.f32 %v1563, %v1577
          %v1608 = vadd.f32 %v1564, %v1573
          %v1609 = vadd.f32 %v1565, %v1577
          %v1610 = vadd.f32 %v1566, %v1573
          %v1611 = vadd.f32 %v1567, %v1577
          %v1612 = vxor.u32 %v1580, 2147483648
          %v1613 = vxor.u32 %v1582, 2147483648
          %v1614 = vxor.u32 %v1584, 2147483648
          %v1615 = vxor.u32 %v1586, 2147483648
          %v1616 = vxor.u32 %v1588, 2147483648
          %v1617 = vxor.u32 %v1590, 2147483648
          %v1618 = vxor.u32 %v1592, 2147483648
          %v1619 = vxor.u32 %v1594, 2147483648
          %v1620 = vxor.u32 %v1596, 2147483648
          %v1621 = vxor.u32 %v1598, 2147483648
          %v1622 = vxor.u32 %v1600, 2147483648
          %v1623 = vxor.u32 %v1602, 2147483648
          %v1624 = vxor.u32 %v1604, 2147483648
          %v1625 = vxor.u32 %v1606, 2147483648
          %v1626 = vxor.u32 %v1608, 2147483648
          %v1627 = vxor.u32 %v1610, 2147483648
          %v1628 = vmul.f32 %v1612, 1.442695
          %v1629 = vpow.pop %v1628
          %v1630 = vmul.f32 %v1613, 1.442695
          %v1631 = vpow.pop %v1630
          %v1632 = vmul.f32 %v1614, 1.442695
          %v1633 = vpow.pop %v1632
          %v1634 = vmul.f32 %v1615, 1.442695
          %v1635 = vpow.pop %v1634
          %v1636 = vmul.f32 %v1616, 1.442695
          %v1637 = vpow.pop %v1636
          %v1638 = vmul.f32 %v1617, 1.442695
          %v1639 = vpow.pop %v1638
          %v1640 = vmul.f32 %v1618, 1.442695
          %v1641 = vpow.pop %v1640
          %v1642 = vmul.f32 %v1619, 1.442695
          %v1643 = vpow.pop %v1642
          %v1644 = vmul.f32 %v1620, 1.442695
          %v1645 = vpow.pop %v1644
          %v1646 = vmul.f32 %v1621, 1.442695
          %v1647 = vpow.pop %v1646
          %v1648 = vmul.f32 %v1622, 1.442695
          %v1649 = vpow.pop %v1648
          %v1650 = vmul.f32 %v1623, 1.442695
          %v1651 = vpow.pop %v1650
          %v1652 = vmul.f32 %v1624, 1.442695
          %v1653 = vpow.pop %v1652
          %v1654 = vmul.f32 %v1625, 1.442695
          %v1655 = vpow.pop %v1654
          %v1656 = vmul.f32 %v1626, 1.442695
          %v1657 = vpow.pop %v1656
          %v1658 = vmul.f32 %v1627, 1.442695
          %v1659 = vpow.pop %v1658
          %v1660 = vadd.f32 %v1629, 1.0
          %v1661 = vadd.f32 %v1631, 1.0
          %v1662 = vadd.f32 %v1633, 1.0
          %v1663 = vadd.f32 %v1635, 1.0
          %v1664 = vadd.f32 %v1637, 1.0
          %v1665 = vadd.f32 %v1639, 1.0
          %v1666 = vadd.f32 %v1641, 1.0
          %v1667 = vadd.f32 %v1643, 1.0
          %v1668 = vadd.f32 %v1645, 1.0
          %v1669 = vadd.f32 %v1647, 1.0
          %v1670 = vadd.f32 %v1649, 1.0
          %v1671 = vadd.f32 %v1651, 1.0
          %v1672 = vadd.f32 %v1653, 1.0
          %v1673 = vadd.f32 %v1655, 1.0
          %v1674 = vadd.f32 %v1657, 1.0
          %v1675 = vadd.f32 %v1659, 1.0
          %v1676 = vrcp.pop %v1660
          %v1677 = vmul.f32 1.0, %v1676
          %v1678 = vrcp.pop %v1661
          %v1679 = vmul.f32 1.0, %v1678
          %v1680 = vrcp.pop %v1662
          %v1681 = vmul.f32 1.0, %v1680
          %v1682 = vrcp.pop %v1663
          %v1683 = vmul.f32 1.0, %v1682
          %v1684 = vrcp.pop %v1664
          %v1685 = vmul.f32 1.0, %v1684
          %v1686 = vrcp.pop %v1665
          %v1687 = vmul.f32 1.0, %v1686
          %v1688 = vrcp.pop %v1666
          %v1689 = vmul.f32 1.0, %v1688
          %v1690 = vrcp.pop %v1667
          %v1691 = vmul.f32 1.0, %v1690
          %v1692 = vrcp.pop %v1668
          %v1693 = vmul.f32 1.0, %v1692
          %v1694 = vrcp.pop %v1669
          %v1695 = vmul.f32 1.0, %v1694
          %v1696 = vrcp.pop %v1670
          %v1697 = vmul.f32 1.0, %v1696
          %v1698 = vrcp.pop %v1671
          %v1699 = vmul.f32 1.0, %v1698
          %v1700 = vrcp.pop %v1672
          %v1701 = vmul.f32 1.0, %v1700
          %v1702 = vrcp.pop %v1673
          %v1703 = vmul.f32 1.0, %v1702
          %v1704 = vrcp.pop %v1674
          %v1705 = vmul.f32 1.0, %v1704
          %v1706 = vrcp.pop %v1675
          %v1707 = vmul.f32 1.0, %v1706
          %v1708 = vtanh.pop %v1581
          %v1709 = vtanh.pop %v1583
          %v1710 = vtanh.pop %v1585
          %v1711 = vtanh.pop %v1587
          %v1712 = vtanh.pop %v1589
          %v1713 = vtanh.pop %v1591
          %v1714 = vtanh.pop %v1593
          %v1715 = vtanh.pop %v1595
          %v1716 = vtanh.pop %v1597
          %v1717 = vtanh.pop %v1599
          %v1718 = vtanh.pop %v1601
          %v1719 = vtanh.pop %v1603
          %v1720 = vtanh.pop %v1605
          %v1721 = vtanh.pop %v1607
          %v1722 = vtanh.pop %v1609
          %v1723 = vtanh.pop %v1611
          %v1724 = vsub.f32 1.0, %v1677
          %v1725 = vsub.f32 1.0, %v1679
          %v1726 = vsub.f32 1.0, %v1681
          %v1727 = vsub.f32 1.0, %v1683
          %v1728 = vsub.f32 1.0, %v1685
          %v1729 = vsub.f32 1.0, %v1687
          %v1730 = vsub.f32 1.0, %v1689
          %v1731 = vsub.f32 1.0, %v1691
          %v1732 = vsub.f32 1.0, %v1693
          %v1733 = vsub.f32 1.0, %v1695
          %v1734 = vsub.f32 1.0, %v1697
          %v1735 = vsub.f32 1.0, %v1699
          %v1736 = vsub.f32 1.0, %v1701
          %v1737 = vsub.f32 1.0, %v1703
          %v1738 = vsub.f32 1.0, %v1705
          %v1739 = vsub.f32 1.0, %v1707
          %v1740 = vmul.f32 %v1724, %v1708
          %v1741 = vmul.f32 %v1725, %v1709
          %v1742 = vmul.f32 %v1726, %v1710
          %v1743 = vmul.f32 %v1727, %v1711
          %v1744 = vmul.f32 %v1728, %v1712
          %v1745 = vmul.f32 %v1729, %v1713
          %v1746 = vmul.f32 %v1730, %v1714
          %v1747 = vmul.f32 %v1731, %v1715
          %v1748 = vmul.f32 %v1732, %v1716
          %v1749 = vmul.f32 %v1733, %v1717
          %v1750 = vmul.f32 %v1734, %v1718
          %v1751 = vmul.f32 %v1735, %v1719
          %v1752 = vmul.f32 %v1736, %v1720
          %v1753 = vmul.f32 %v1737, %v1721
          %v1754 = vmul.f32 %v1738, %v1722
          %v1755 = vmul.f32 %v1739, %v1723
          %v1756 = vmax.f32 %v1740, 0.0
          %v1757 = vmax.f32 %v1741, 0.0
          %v1758 = vmax.f32 %v1742, 0.0
          %v1759 = vmax.f32 %v1743, 0.0
          %v1760 = vmax.f32 %v1744, 0.0
          %v1761 = vmax.f32 %v1745, 0.0
          %v1762 = vmax.f32 %v1746, 0.0
          %v1763 = vmax.f32 %v1747, 0.0
          %v1764 = vmax.f32 %v1748, 0.0
          %v1765 = vmax.f32 %v1749, 0.0
          %v1766 = vmax.f32 %v1750, 0.0
          %v1767 = vmax.f32 %v1751, 0.0
          %v1768 = vmax.f32 %v1752, 0.0
          %v1769 = vmax.f32 %v1753, 0.0
          %v1770 = vmax.f32 %v1754, 0.0
          %v1771 = vmax.f32 %v1755, 0.0
          %v1772 = vld [vmem:[#allocation6] sm:$0xff]
          %v1773 = vld [vmem:[#allocation6 + $0x8] sm:$0xff]
          %v1774 = vld [vmem:[#allocation6 + $0x10] sm:$0xff]
          %v1775 = vld [vmem:[#allocation6 + $0x18] sm:$0xff]
          %v1776 = vld [vmem:[#allocation6 + $0x20] sm:$0xff]
          %v1777 = vld [vmem:[#allocation6 + $0x28] sm:$0xff]
          %v1778 = vld [vmem:[#allocation6 + $0x30] sm:$0xff]
          %v1779 = vld [vmem:[#allocation6 + $0x38] sm:$0xff]
          %v1780 = vld [vmem:[#allocation6 + $0x40] sm:$0xff]
          %v1781 = vld [vmem:[#allocation6 + $0x48] sm:$0xff]
          %v1782 = vld [vmem:[#allocation6 + $0x50] sm:$0xff]
          %v1783 = vld [vmem:[#allocation6 + $0x58] sm:$0xff]
          %v1784 = vld [vmem:[#allocation6 + $0x60] sm:$0xff]
          %v1785 = vld [vmem:[#allocation6 + $0x68] sm:$0xff]
          %v1786 = vld [vmem:[#allocation6 + $0x70] sm:$0xff]
          %v1787 = vld [vmem:[#allocation6 + $0x78] sm:$0xff]
          %v1788 = vld [vmem:[%s5] sm:$0x1]
          %v1790 = vlaneseq
          %v1791 = vshrl.u32 %v1790, 7
          %v1792 = vsub.s32 0, %v1791
          %v1793 = vrot.slane %v1788, %v1792
          %1795 = vmatprep.subr.mxu0 0.0
          %1796 = vmatpush1.msra.mxu0 %v1772
          %1797 = vmatprep.subr.mxu0 0.0
          %1798 = vmatpush1.msra.mxu0 %v1773
          %1799 = vmatprep.subr.mxu0 0.0
          %1800 = vmatpush1.msra.mxu0 %v1774
          %1801 = vmatprep.subr.mxu0 0.0
          %1802 = vmatpush1.msra.mxu0 %v1775
          %1803 = vmatprep.subr.mxu0 0.0
          %1804 = vmatpush1.msra.mxu0 %v1776
          %1805 = vmatprep.subr.mxu0 0.0
          %1806 = vmatpush1.msra.mxu0 %v1777
          %1807 = vmatprep.subr.mxu0 0.0
          %1808 = vmatpush1.msra.mxu0 %v1778
          %1809 = vmatprep.subr.mxu0 0.0
          %1810 = vmatpush1.msra.mxu0 %v1779
          %1811 = vmatprep.subr.mxu0 0.0
          %1812 = vmatpush1.msra.mxu0 %v1780
          %1813 = vmatprep.subr.mxu0 0.0
          %1814 = vmatpush1.msra.mxu0 %v1781
          %1815 = vmatprep.subr.mxu0 0.0
          %1816 = vmatpush1.msra.mxu0 %v1782
          %1817 = vmatprep.subr.mxu0 0.0
          %1818 = vmatpush1.msra.mxu0 %v1783
          %1819 = vmatprep.subr.mxu0 0.0
          %1820 = vmatpush1.msra.mxu0 %v1784
          %1821 = vmatprep.subr.mxu0 0.0
          %1822 = vmatpush1.msra.mxu0 %v1785
          %1823 = vmatprep.subr.mxu0 0.0
          %1824 = vmatpush1.msra.mxu0 %v1786
          %1825 = vmatprep.subr.mxu0 0.0
          %1826 = vmatpush1.msra.mxu0 %v1787
          %1827 = vmatprep.subr.mxu0 0.0
          %1828 = vmatpush1.msra.mxu0 0.0
          %1829 = vmatprep.subr.mxu0 0.0
          %1830 = vmatpush1.msra.mxu0 0.0
          %1831 = vmatprep.subr.mxu0 0.0
          %1832 = vmatpush1.msra.mxu0 0.0
          %1833 = vmatprep.subr.mxu0 0.0
          %1834 = vmatpush1.msra.mxu0 0.0
          %1835 = vmatprep.subr.mxu0 0.0
          %1836 = vmatpush1.msra.mxu0 0.0
          %1837 = vmatprep.subr.mxu0 0.0
          %1838 = vmatpush1.msra.mxu0 0.0
          %1839 = vmatprep.subr.mxu0 0.0
          %1840 = vmatpush1.msra.mxu0 0.0
          %1841 = vmatprep.subr.mxu0 0.0
          %1842 = vmatpush1.msra.mxu0 0.0
          %1843 = vmatprep.subr.mxu0 0.0
          %1844 = vmatpush1.msra.mxu0 0.0
          %1845 = vmatprep.subr.mxu0 0.0
          %1846 = vmatpush1.msra.mxu0 0.0
          %1847 = vmatprep.subr.mxu0 0.0
          %1848 = vmatpush1.msra.mxu0 0.0
          %1849 = vmatprep.subr.mxu0 0.0
          %1850 = vmatpush1.msra.mxu0 0.0
          %1851 = vmatprep.subr.mxu0 0.0
          %1852 = vmatpush1.msra.mxu0 0.0
          %1853 = vmatprep.subr.mxu0 0.0
          %1854 = vmatpush1.msra.mxu0 0.0
          %1855 = vmatprep.subr.mxu0 0.0
          %1856 = vmatpush1.msra.mxu0 0.0
          %1857 = vmatprep.subr.mxu0 0.0
          %1858 = vmatpush1.msra.mxu0 0.0
          %1859 = vmatprep.mubr.f32.mxu0 0.0
          %1860 = vmatmul.mubr.f32.gmra.mrb[0].mxu0 %v1756
          %v1861 = vpop.f32.mrb[0].mxu0
          %v1862 = vadd.f32 %v1793, %v1861
          %v1863 = vpop.f32.mrb[0].mxu0
          %1864 = vmatprep.mubr.f32.mxu0 0.0
          %1865 = vmatmul.mubr.f32.gmra.mrb[0].mxu0 %v1757
          %v1866 = vpop.f32.mrb[0].mxu0
          %v1867 = vadd.f32 %v1793, %v1866
          %v1868 = vpop.f32.mrb[0].mxu0
          %1869 = vmatprep.mubr.f32.mxu0 0.0
          %1870 = vmatmul.mubr.f32.gmra.mrb[0].mxu0 %v1758
          %v1871 = vpop.f32.mrb[0].mxu0
          %v1872 = vadd.f32 %v1793, %v1871
          %v1873 = vpop.f32.mrb[0].mxu0
          %1874 = vmatprep.mubr.f32.mxu0 0.0
          %1875 = vmatmul.mubr.f32.gmra.mrb[0].mxu0 %v1759
          %v1876 = vpop.f32.mrb[0].mxu0
          %v1877 = vadd.f32 %v1793, %v1876
          %v1878 = vpop.f32.mrb[0].mxu0
          %1879 = vmatprep.mubr.f32.mxu0 0.0
          %1880 = vmatmul.mubr.f32.gmra.mrb[0].mxu0 %v1760
          %v1881 = vpop.f32.mrb[0].mxu0
          %v1882 = vadd.f32 %v1793, %v1881
          %v1883 = vpop.f32.mrb[0].mxu0
          %1884 = vmatprep.mubr.f32.mxu0 0.0
          %1885 = vmatmul.mubr.f32.gmra.mrb[0].mxu0 %v1761
          %v1886 = vpop.f32.mrb[0].mxu0
          %v1887 = vadd.f32 %v1793, %v1886
          %v1888 = vpop.f32.mrb[0].mxu0
          %1889 = vmatprep.mubr.f32.mxu0 0.0
          %1890 = vmatmul.mubr.f32.gmra.mrb[0].mxu0 %v1762
          %v1891 = vpop.f32.mrb[0].mxu0
          %v1892 = vadd.f32 %v1793, %v1891
          %v1893 = vpop.f32.mrb[0].mxu0
          %1894 = vmatprep.mubr.f32.mxu0 0.0
          %1895 = vmatmul.mubr.f32.gmra.mrb[0].mxu0 %v1763
          %v1896 = vpop.f32.mrb[0].mxu0
          %v1897 = vadd.f32 %v1793, %v1896
          %v1898 = vpop.f32.mrb[0].mxu0
          %1899 = vmatprep.mubr.f32.mxu0 0.0
          %1900 = vmatmul.mubr.f32.gmra.mrb[0].mxu0 %v1764
          %v1901 = vpop.f32.mrb[0].mxu0
          %v1902 = vadd.f32 %v1793, %v1901
          %v1903 = vpop.f32.mrb[0].mxu0
          %1904 = vmatprep.mubr.f32.mxu0 0.0
          %1905 = vmatmul.mubr.f32.gmra.mrb[0].mxu0 %v1765
          %v1906 = vpop.f32.mrb[0].mxu0
          %v1907 = vadd.f32 %v1793, %v1906
          %v1908 = vpop.f32.mrb[0].mxu0
          %1909 = vmatprep.mubr.f32.mxu0 0.0
          %1910 = vmatmul.mubr.f32.gmra.mrb[0].mxu0 %v1766
          %v1911 = vpop.f32.mrb[0].mxu0
          %v1912 = vadd.f32 %v1793, %v1911
          %v1913 = vpop.f32.mrb[0].mxu0
          %1914 = vmatprep.mubr.f32.mxu0 0.0
          %1915 = vmatmul.mubr.f32.gmra.mrb[0].mxu0 %v1767
          %v1916 = vpop.f32.mrb[0].mxu0
          %v1917 = vadd.f32 %v1793, %v1916
          %v1918 = vpop.f32.mrb[0].mxu0
          %1919 = vmatprep.mubr.f32.mxu0 0.0
          %1920 = vmatmul.mubr.f32.gmra.mrb[0].mxu0 %v1768
          %v1921 = vpop.f32.mrb[0].mxu0
          %v1922 = vadd.f32 %v1793, %v1921
          %v1923 = vpop.f32.mrb[0].mxu0
          %1924 = vmatprep.mubr.f32.mxu0 0.0
          %1925 = vmatmul.mubr.f32.gmra.mrb[0].mxu0 %v1769
          %v1926 = vpop.f32.mrb[0].mxu0
          %v1927 = vadd.f32 %v1793, %v1926
          %v1928 = vpop.f32.mrb[0].mxu0
          %1929 = vmatprep.mubr.f32.mxu0 0.0
          %1930 = vmatmul.mubr.f32.gmra.mrb[0].mxu0 %v1770
          %v1931 = vpop.f32.mrb[0].mxu0
          %v1932 = vadd.f32 %v1793, %v1931
          %v1933 = vpop.f32.mrb[0].mxu0
          %1934 = vmatprep.mubr.f32.mxu0 0.0
          %1935 = vmatmul.mubr.f32.gmra.mrb[0].mxu0 %v1771
          %v1936 = vpop.f32.mrb[0].mxu0
          %v1937 = vadd.f32 %v1793, %v1936
          %v1938 = vpop.f32.mrb[0].mxu0
          %1939 = vdwg.mxu0
          %1940 = vst [vmem:[#allocation8] sm:$0xff] %v1862
          %1941 = vst [vmem:[#allocation8 + $0x8] sm:$0xff] %v1867
          %1942 = vst [vmem:[#allocation8 + $0x10] sm:$0xff] %v1872
          %1943 = vst [vmem:[#allocation8 + $0x18] sm:$0xff] %v1877
          %1944 = vst [vmem:[#allocation8 + $0x20] sm:$0xff] %v1882
          %1945 = vst [vmem:[#allocation8 + $0x28] sm:$0xff] %v1887
          %1946 = vst [vmem:[#allocation8 + $0x30] sm:$0xff] %v1892
          %1947 = vst [vmem:[#allocation8 + $0x38] sm:$0xff] %v1897
          %1948 = vst [vmem:[#allocation8 + $0x40] sm:$0xff] %v1902
          %1949 = vst [vmem:[#allocation8 + $0x48] sm:$0xff] %v1907
          %1950 = vst [vmem:[#allocation8 + $0x50] sm:$0xff] %v1912
          %1951 = vst [vmem:[#allocation8 + $0x58] sm:$0xff] %v1917
          %1952 = vst [vmem:[#allocation8 + $0x60] sm:$0xff] %v1922
          %1953 = vst [vmem:[#allocation8 + $0x68] sm:$0xff] %v1927
          %1954 = vst [vmem:[#allocation8 + $0x70] sm:$0xff] %v1932
          %1955 = vst [vmem:[#allocation8 + $0x78] sm:$0xff] %v1937
        $region60: #{tpu_custom_call.1} parent=43 // pred_fallthru
          _
        // Predicated region
        $region61: #{tpu_custom_call.1} parent=43 // pred_check
          %p1956 = pneg %p181
        $region62: #{tpu_custom_call.1} parent=43 // pred_check_branch
          %1958 = sbr.rel (%p1956) target = $region64
        $region63: #{tpu_custom_call.1} parent=43 // pred_region
          %s1959 = smul.u32 16, %s25
          %s1961 = ssub.s32 2048, 2048
          %1962 = vsyncadd [#allocation5], %s1961
          %s1963 = smul.addr %s1959, 128
          %s1964 = scalar_lea.hbm %s6, %s1963
          %s1965 = sshll.u32 [#allocation8], 4
          %s1966 = int_to_ptr.vmem [resolvable:$true] %s1965
          %1971 = dma.vmem_to_hbm [thread:$0]  %s1966, 2048, %s1964, [#allocation5], 128, 128, 8
        $region64: #{tpu_custom_call.1} parent=43 // pred_fallthru
          _
        // Predicated region
        $region65: #{tpu_custom_call.1} parent=43 // pred_check
          %p1972 = pneg %p181
        $region66: #{tpu_custom_call.1} parent=43 // pred_check_branch
          %1974 = sbr.rel (%p1972) target = $region68
        $region67: #{tpu_custom_call.1} parent=43 // pred_region
          %1975 = dma.done [#allocation5], 2048
        $region68: #{tpu_custom_call.1} parent=43 // pred_fallthru
          _
      $region44: #{tpu_custom_call.1} parent=5 // pred_fallthru
        _
      %p1976 = scmp.le.s32.totalorder 2, %s15
      // Predicated region
      $region69: #{tpu_custom_call.1} parent=5 // pred_check
        %p1977 = pneg %p1976
      $region70: #{tpu_custom_call.1} parent=5 // pred_check_branch
        %1979 = sbr.rel (%p1977) target = $region72
      $region71: #{tpu_custom_call.1} parent=5 // pred_region
        %s1980 = ssub.s32 %s15, 2
      $region72: #{tpu_custom_call.1} parent=5 // pred_fallthru
        _
    $region6: #{tpu_custom_call.1} parent=1 // loop_footer
      %s19 = sadd.s32 1, %s15
    $region7: #{tpu_custom_call.1} parent=1 // loop_footer_branch
      %14 = sbr.rel target = $region3
    $region8: #{tpu_custom_call.1} parent=1 // loop_exit
      _
    %1981 = vsyncpa [#allocation4], 1
    %s1982 = scalar_lea.sflag [#allocation4], 1
    %1983 = vsyncpa %s1982, 1
    %1984 = vsyncpa [#allocation7], 1
    %1985 = vsyncpa [#allocation5], 1
    %s1986 = scalar_lea.sflag [#allocation5], 1
    %1987 = vsyncpa %s1986, 1

</llo_original>
